<compile_context>
chip_gen: v7x
topology: tpu7x:2x2x1
jax: 0.10.0
libtpu: 0.0.40
codegen_flags: <defaults>
</compile_context>

<pallas_src>
import functools
import math

import jax
import jax.numpy as jnp
import numpy as np
from jax.experimental import pallas as pl
from jax.experimental.pallas import tpu as pltpu


def _build_tap_groups(K, C):
    """Group the K*K taps so each patch store is a whole number of 8-sublane
    tiles; zero-pad rows appear only at the very end of the contraction."""
    taps = [(dy, dx) for dy in range(K) for dx in range(K)]
    groups = []
    row_off = 0
    cur, rows = [], 0
    for i, t in enumerate(taps):
        cur.append(t)
        rows += C
        if rows % 8 == 0 or i == len(taps) - 1:
            pad = (-rows) % 8
            groups.append((row_off, tuple(cur), pad))
            row_off += rows + pad
            cur, rows = [], 0
    # invariant relied on by the weight / mask layout: only the last group pads
    assert all(g[2] == 0 for g in groups[:-1])
    return tuple(groups), row_off          # row_off == padded contraction length


def _mdsc_kernel(Bt, M, K, C, O, H, W, groups,
                 x_ref, w_ref, b_ref, gmask_ref, fc1_ref, fc2_ref,
                 out_ref, xpad_ref, patch_ref, zf_ref):
    """One grid step = Bt samples. H*W stays on the 128-lane axis throughout."""
    HW = H * W
    P = K // 2
    interior = P + P * W

    # Zero the flat padded-sample buffer once per step: only the halo must be
    # zero, and the interior is fully rewritten for every sample below.
    xpad_ref[...] = jnp.zeros_like(xpad_ref)

    # ---- im2col for all Bt samples of this step ------------------------------
    for b in range(Bt):
        xpad_ref[:, pl.ds(interior, HW)] = x_ref[pl.ds(b * C, C), :]
        for row_off, tap_list, pad_rows in groups:
            pieces = [xpad_ref[:, pl.ds(dy * W + dx, HW)] for dy, dx in tap_list]
            if pad_rows:
                pieces.append(jnp.zeros((pad_rows, HW), jnp.float32))
            blk = pieces[0] if len(pieces) == 1 else jnp.concatenate(pieces, axis=0)
            rows = len(tap_list) * C + pad_rows
            blk = blk * gmask_ref[pl.ds(row_off, rows), :]        # column-wrap mask
            patch_ref[pl.ds(row_off, rows), pl.ds(b * HW, HW)] = (
                blk.astype(patch_ref.dtype))

    # ---- fused depthwise+pointwise of ALL branches: one MXU matmul -----------
    zf_ref[...] = (jnp.dot(w_ref[...], patch_ref[...],
                           preferred_element_type=jnp.float32)
                   + b_ref[...])                                  # (M*O, Bt*HW)

    # ---- per-sample InstanceNorm2d (eps=1e-5) + LeakyReLU(0.01) + GAP --------
    gaps = []
    for b in range(Bt):
        z_b = zf_ref[:, pl.ds(b * HW, HW)]                        # (M*O, HW)
        mean = jnp.mean(z_b, axis=1, keepdims=True)
        var = jnp.mean((z_b - mean) ** 2, axis=1, keepdims=True)
        zn = (z_b - mean) * jax.lax.rsqrt(var + 1e-5)
        f_b = jnp.where(zn > 0, zn, 0.01 * zn)
        zf_ref[:, pl.ds(b * HW, HW)] = f_b                        # stage features
        u = f_b[0:O, :]
        for m in range(1, M):
            u = u + f_b[m * O:(m + 1) * O, :]
        gaps.append(jnp.mean(u, axis=1, keepdims=True))           # (O, 1)

    # ---- SK attention, FCs batched over the Bt samples of this step ----------
    if Bt < 8:                                   # pad N so the MXU op is well-formed
        gaps.append(jnp.zeros((O, 8 - Bt), jnp.float32))
    gap_all = gaps[0] if len(gaps) == 1 else jnp.concatenate(gaps, axis=1)
    h1 = jnp.maximum(jnp.dot(fc1_ref[...], gap_all,
                             preferred_element_type=jnp.float32), 0.0)
    z2 = jnp.dot(fc2_ref[...], h1, preferred_element_type=jnp.float32)  # (M*O, >=Bt)

    # softmax over branches (per output channel, per sample column)
    s = [z2[m * O:(m + 1) * O, :] for m in range(M)]
    mx = s[0]
    for sm in s[1:]:
        mx = jnp.maximum(mx, sm)
    e = [jnp.exp(sm - mx) for sm in s]
    den = e[0]
    for em in e[1:]:
        den = den + em
    inv = 1.0 / den
    attn = [em * inv for em in e]                                 # (O, >=Bt)

    # ---- weighted fuse + lane-dense aligned output stores ---------------------
    for b in range(Bt):
        f_b = zf_ref[:, pl.ds(b * HW, HW)]
        fused = f_b[0:O, :] * attn[0][:, b:b + 1]
        for m in range(1, M):
            fused = fused + f_b[m * O:(m + 1) * O, :] * attn[m][:, b:b + 1]
        out_ref[pl.ds(b * O, O), :] = fused.astype(out_ref.dtype)


def _fuse_weights(params, kernel_sizes, C, O, kkc_pad, weight_dtype):
    """Fold depthwise + pointwise of every branch into one (M*O, KKCp) matrix."""
    M = len(kernel_sizes)
    K = max(kernel_sizes)
    P = K // 2
    w_all = jnp.zeros((K, K, C, M * O), jnp.float32)
    for m, k in enumerate(kernel_sizes):
        off = P - k // 2
        wf = (params["dw_w"][m][:, :, :, None].astype(jnp.float32)
              * params["pw_w"][m][None, None, :, :].astype(jnp.float32))
        w_all = w_all.at[off:off + k, off:off + k, :, m * O:(m + 1) * O].set(wf)
    w_t = w_all.reshape(K * K * C, M * O).T                       # (M*O, K*K*C)
    w_t = jnp.pad(w_t, ((0, 0), (0, kkc_pad - K * K * C))).astype(weight_dtype)
    b_all = jnp.concatenate(
        [params["dw_b"][m] @ params["pw_w"][m] + params["pw_b"][m]
         for m in range(M)], axis=0).reshape(M * O, 1).astype(jnp.float32)
    return w_t, b_all


def multi_dwsep_conv2d(x_nchw, params, kernel_sizes, block_batch=None,
                       use_bf16=False):
    """NCHW in -> NCHW out; one pallas_call, Bt samples per grid step."""
    B, C, H, W = x_nchw.shape
    O = params["pw_w"].shape[-1]
    M = len(kernel_sizes)
    K = max(kernel_sizes)
    P = K // 2
    HW = H * W
    L = 2 * P + (H + 2 * P) * W                  # flat padded-sample length
    d = params["fc1_w"].shape[0]

    groups, kkc_pad = _build_tap_groups(K, C)

    # Batch tile: amortize per-step overhead; keep >= 2 grid steps when B allows
    # (v7x megacore via the "parallel" axis); round so Bt*C and Bt*O are dense
    # multiples of 8 sublanes for the pipeline DMA tiles.
    def _unit(n):
        return 8 // math.gcd(n, 8)
    unit = _unit(C) * _unit(O) // math.gcd(_unit(C), _unit(O))
    if block_batch is None:
        block_batch = 1 if B <= 1 else min(8, max(1, (B + 1) // 2))
    Bt = -(-block_batch // unit) * unit
    G = -(-B // Bt)
    B_pad = G * Bt

    compute_dtype = jnp.bfloat16 if use_bf16 else jnp.float32
    w_all_t, b_all = _fuse_weights(params, kernel_sizes, C, O, kkc_pad,
                                   compute_dtype)

    # Host-precomputed per-row column-wrap masks, expanded to the patch-row
    # layout so the kernel never broadcasts them (one full-tile multiply/group).
    w_coord = np.arange(HW, dtype=np.int64) % W
    gmask = np.zeros((kkc_pad, HW), np.float32)
    for row_off, tap_list, _pad in groups:
        r = row_off
        for _dy, dx in tap_list:
            m_dx = ((w_coord >= P - dx) & (w_coord < W + P - dx)).astype(np.float32)
            gmask[r:r + C, :] = m_dx
            r += C
    gmask = jnp.asarray(gmask)

    x = x_nchw.astype(jnp.float32)
    if B_pad != B:
        x = jnp.concatenate(
            [x, jnp.zeros((B_pad - B, C, H, W), jnp.float32)], axis=0)
    x_flat = x.reshape(B_pad * C, HW)            # free reshape, no transpose

    kernel = functools.partial(_mdsc_kernel, Bt, M, K, C, O, H, W, groups)

    out = pl.pallas_call(
        kernel,
        out_shape=jax.ShapeDtypeStruct((B_pad * O, HW), jnp.float32),
        grid_spec=pltpu.PrefetchScalarGridSpec(
            num_scalar_prefetch=0,
            grid=(G,),
            in_specs=[
                pl.BlockSpec((Bt * C, HW), lambda s: (s, 0)),       # Bt samples
                pl.BlockSpec((M * O, kkc_pad), lambda s: (0, 0)),   # fused dw+pw W
                pl.BlockSpec((M * O, 1), lambda s: (0, 0)),         # fused bias
                pl.BlockSpec((kkc_pad, HW), lambda s: (0, 0)),      # tap col masks
                pl.BlockSpec((d, O), lambda s: (0, 0)),             # fc1 (torch)
                pl.BlockSpec((M * O, d), lambda s: (0, 0)),         # fc2 (torch)
            ],
            out_specs=pl.BlockSpec((Bt * O, HW), lambda s: (s, 0)),
            scratch_shapes=[
                pltpu.VMEM((C, L), jnp.float32),                 # padded flat sample
                pltpu.VMEM((kkc_pad, Bt * HW), compute_dtype),   # im2col patches
                pltpu.VMEM((M * O, Bt * HW), jnp.float32),       # conv out / features
            ],
        ),
        compiler_params=pltpu.CompilerParams(
            dimension_semantics=("parallel",),
            vmem_limit_bytes=32 * 1024 * 1024,
        ),
    )(x_flat, w_all_t, b_all, gmask,
      params["fc1_w"].astype(jnp.float32), params["fc2_w"].astype(jnp.float32))

    out = out.reshape(B_pad, O, HW)[:B]
    return out.reshape(B, O, H, W)               # free reshape, channel-major


def reference(x_nchw, params, kernel_sizes):
    """Pure-JAX reference (lax conv) for correctness checking."""
    x = jnp.transpose(x_nchw, (0, 2, 3, 1)).astype(jnp.float32)
    B, H, W, C = x.shape
    O = params["pw_w"].shape[-1]
    M = len(kernel_sizes)
    feats = []
    for m, k in enumerate(kernel_sizes):
        wd = params["dw_w"][m].reshape(k, k, 1, C)
        y = jax.lax.conv_general_dilated(
            x, wd, (1, 1), [(k // 2, k // 2)] * 2,
            dimension_numbers=("NHWC", "HWIO", "NHWC"),
            feature_group_count=C) + params["dw_b"][m]
        z = jnp.einsum("bhwc,co->bhwo", y, params["pw_w"][m]) + params["pw_b"][m]
        mean = jnp.mean(z, axis=(1, 2), keepdims=True)
        var = jnp.mean((z - mean) ** 2, axis=(1, 2), keepdims=True)
        z = (z - mean) * jax.lax.rsqrt(var + 1e-5)
        z = jnp.where(z > 0, z, 0.01 * z)
        feats.append(z)
    feats = jnp.stack(feats, axis=1)                      # (B, M, H, W, O)
    feats_u = jnp.sum(feats, axis=1)
    feats_s = jnp.mean(feats_u, axis=(1, 2))              # (B, O)
    h1 = jnp.maximum(feats_s @ params["fc1_w"].T, 0.0)
    z2 = h1 @ params["fc2_w"].T
    sel = jax.nn.softmax(z2.reshape(B, M, O), axis=1)
    fused = jnp.sum(feats * sel[:, :, None, None, :], axis=1)
    return jnp.transpose(fused, (0, 3, 1, 2))


def init_params(key, in_channels, out_channels, kernel_sizes, r=16, L=32):
    """Deterministic synthetic parameters matching the module's shapes."""
    M = len(kernel_sizes)
    d = max(int(out_channels / r), L)
    keys = jax.random.split(key, M + 5)
    dw_w = []
    for m, k in enumerate(kernel_sizes):
        # torch depthwise weight (C, 1, k, k) -> stored here as (k, k, C)
        dw_w.append(0.2 * jax.random.normal(keys[m], (k, k, in_channels), jnp.float32))
    dw_b = 0.1 * jax.random.normal(keys[M], (M, in_channels), jnp.float32)
    # torch pointwise weight (O, C, 1, 1) -> stored as (M, C, O)
    pw_w = 0.2 * jax.random.normal(keys[M + 1], (M, in_channels, out_channels), jnp.float32)
    pw_b = 0.1 * jax.random.normal(keys[M + 2], (M, out_channels), jnp.float32)
    # torch layout: fc1 (d, O), fc2 (O*M, d); no biases
    fc1_w = 0.2 * jax.random.normal(keys[M + 3], (d, out_channels), jnp.float32)
    fc2_w = 0.2 * jax.random.normal(keys[M + 4], (out_channels * M, d), jnp.float32)
    return {"dw_w": dw_w, "dw_b": dw_b, "pw_w": pw_w, "pw_b": pw_b,
            "fc1_w": fc1_w, "fc2_w": fc2_w}


if __name__ == "__main__":
    # small shapes consistent with the module's forward
    B, C_in, C_out, H, W = 2, 4, 8, 16, 16
    kernel_sizes = [3, 5]

    key = jax.random.PRNGKey(0)
    k_x, k_p = jax.random.split(key)
    x = jax.random.normal(k_x, (B, C_in, H, W), jnp.float32)   # NCHW like PyTorch
    params = init_params(k_p, C_in, C_out, kernel_sizes)

    out = jax.block_until_ready(multi_dwsep_conv2d(x, params, kernel_sizes))
    ref = jax.block_until_ready(reference(x, params, kernel_sizes))
    np.testing.assert_allclose(np.asarray(out), np.asarray(ref), rtol=2e-4, atol=2e-4)

    # Exercise multi-sample grid steps + batch-tail padding (Bt=4, grid=2, B_pad=8).
    B2 = 5
    x2 = jax.random.normal(jax.random.PRNGKey(1), (B2, C_in, H, W), jnp.float32)
    out2 = jax.block_until_ready(multi_dwsep_conv2d(x2, params, kernel_sizes))
    ref2 = jax.block_until_ready(reference(x2, params, kernel_sizes))
    np.testing.assert_allclose(np.asarray(out2), np.asarray(ref2), rtol=2e-4, atol=2e-4)

    # Optional bf16-operand path (MXU-native on v6e/v7x); looser tolerance by design.
    out_bf = jax.block_until_ready(
        multi_dwsep_conv2d(x2, params, kernel_sizes, use_bf16=True))
    assert bool(jnp.all(jnp.isfinite(out_bf)))
    np.testing.assert_allclose(np.asarray(out_bf), np.asarray(ref2), rtol=1e-1, atol=1e-1)

    # TODO(synk): is_n8_head=True branch (N8Head MLP + squeeze 3x3 conv) is not
    # exercised by the default forward (squeeze=Identity) and is omitted here.
    print("KERNEL_OK")
</pallas_src>

<mosaic_0001>
module attributes {stable_mosaic.version = 11 : i64} {
  func.func @_mdsc_kernel(%arg0: i32, %arg1: memref<8x256xf32, #tpu.memory_space<vmem>>, %arg2: memref<16x104xf32, #tpu.memory_space<vmem>>, %arg3: memref<16x1xf32, #tpu.memory_space<vmem>>, %arg4: memref<104x256xf32, #tpu.memory_space<vmem>>, %arg5: memref<32x8xf32, #tpu.memory_space<vmem>>, %arg6: memref<16x32xf32, #tpu.memory_space<vmem>>, %arg7: memref<16x256xf32, #tpu.memory_space<vmem>>, %arg8: memref<4x324xf32, #tpu.memory_space<vmem>>, %arg9: memref<104x512xf32, #tpu.memory_space<vmem>>, %arg10: memref<16x512xf32, #tpu.memory_space<vmem>>) attributes {dimension_semantics = [#tpu.dimension_semantics<parallel>], iteration_bounds = array<i64: 1>, scalar_prefetch = 0 : i64, scratch_operands = 3 : i64, tpu.core_type = #tpu.core_type<tc>, window_params = [{transform_indices = @transform_0, window_bounds = array<i64: 8, 256>}, {pipeline_mode = #tpu.pipeline_mode<synchronous>, transform_indices = @transform_1, window_bounds = array<i64: 16, 104>}, {pipeline_mode = #tpu.pipeline_mode<synchronous>, transform_indices = @transform_2, window_bounds = array<i64: 16, 1>}, {pipeline_mode = #tpu.pipeline_mode<synchronous>, transform_indices = @transform_3, window_bounds = array<i64: 104, 256>}, {pipeline_mode = #tpu.pipeline_mode<synchronous>, transform_indices = @transform_4, window_bounds = array<i64: 32, 8>}, {pipeline_mode = #tpu.pipeline_mode<synchronous>, transform_indices = @transform_5, window_bounds = array<i64: 16, 32>}, {transform_indices = @transform_6, window_bounds = array<i64: 16, 256>}]} {
    %cst = arith.constant 0.000000e+00 : f32
    %0 = vector.broadcast %cst : f32 to vector<4x324xf32>
    %c0 = arith.constant 0 : index
    %c0_0 = arith.constant 0 : index
    %1 = vector.load %arg8[%c0, %c0_0] : memref<4x324xf32, #tpu.memory_space<vmem>>, vector<4x324xf32>
    tpu.vector_store %arg8[%c0, %c0_0], %0 {strides = array<i32>} : memref<4x324xf32, #tpu.memory_space<vmem>>, vector<4x324xf32>,
    %c0_1 = arith.constant 0 : index
    %c0_2 = arith.constant 0 : index
    %2 = vector.load %arg1[%c0_1, %c0_2] : memref<8x256xf32, #tpu.memory_space<vmem>>, vector<4x256xf32>
    %c0_3 = arith.constant 0 : index
    %c34 = arith.constant 34 : index
    %3 = vector.load %arg8[%c0_3, %c34] : memref<4x324xf32, #tpu.memory_space<vmem>>, vector<4x256xf32>
    tpu.vector_store %arg8[%c0_3, %c34], %2 {strides = array<i32>} : memref<4x324xf32, #tpu.memory_space<vmem>>, vector<4x256xf32>,
    %c0_4 = arith.constant 0 : index
    %c0_5 = arith.constant 0 : index
    %4 = vector.load %arg8[%c0_4, %c0_5] : memref<4x324xf32, #tpu.memory_space<vmem>>, vector<4x256xf32>
    %c0_6 = arith.constant 0 : index
    %c1 = arith.constant 1 : index
    %5 = vector.load %arg8[%c0_6, %c1] : memref<4x324xf32, #tpu.memory_space<vmem>>, vector<4x256xf32>
    %6 = tpu.concatenate %4, %5 in 0 : vector<4x256xf32>, vector<4x256xf32> -> vector<8x256xf32>
    %c0_7 = arith.constant 0 : index
    %c0_8 = arith.constant 0 : index
    %7 = vector.load %arg4[%c0_7, %c0_8] : memref<104x256xf32, #tpu.memory_space<vmem>>, vector<8x256xf32>
    %8 = arith.mulf %6, %7 : vector<8x256xf32>
    %c0_9 = arith.constant 0 : index
    %c0_10 = arith.constant 0 : index
    %9 = vector.load %arg9[%c0_9, %c0_10] : memref<104x512xf32, #tpu.memory_space<vmem>>, vector<8x256xf32>
    tpu.vector_store %arg9[%c0_9, %c0_10], %8 {strides = array<i32>} : memref<104x512xf32, #tpu.memory_space<vmem>>, vector<8x256xf32>,
    %c0_11 = arith.constant 0 : index
    %c2 = arith.constant 2 : index
    %10 = vector.load %arg8[%c0_11, %c2] : memref<4x324xf32, #tpu.memory_space<vmem>>, vector<4x256xf32>
    %c0_12 = arith.constant 0 : index
    %c3 = arith.constant 3 : index
    %11 = vector.load %arg8[%c0_12, %c3] : memref<4x324xf32, #tpu.memory_space<vmem>>, vector<4x256xf32>
    %12 = tpu.concatenate %10, %11 in 0 : vector<4x256xf32>, vector<4x256xf32> -> vector<8x256xf32>
    %c8 = arith.constant 8 : index
    %c0_13 = arith.constant 0 : index
    %13 = vector.load %arg4[%c8, %c0_13] : memref<104x256xf32, #tpu.memory_space<vmem>>, vector<8x256xf32>
    %14 = arith.mulf %12, %13 : vector<8x256xf32>
    %c8_14 = arith.constant 8 : index
    %c0_15 = arith.constant 0 : index
    %15 = vector.load %arg9[%c8_14, %c0_15] : memref<104x512xf32, #tpu.memory_space<vmem>>, vector<8x256xf32>
    tpu.vector_store %arg9[%c8_14, %c0_15], %14 {strides = array<i32>} : memref<104x512xf32, #tpu.memory_space<vmem>>, vector<8x256xf32>,
    %c0_16 = arith.constant 0 : index
    %c4 = arith.constant 4 : index
    %16 = vector.load %arg8[%c0_16, %c4] : memref<4x324xf32, #tpu.memory_space<vmem>>, vector<4x256xf32>
    %c0_17 = arith.constant 0 : index
    %c16 = arith.constant 16 : index
    %17 = vector.load %arg8[%c0_17, %c16] : memref<4x324xf32, #tpu.memory_space<vmem>>, vector<4x256xf32>
    %18 = tpu.concatenate %16, %17 in 0 : vector<4x256xf32>, vector<4x256xf32> -> vector<8x256xf32>
    %c16_18 = arith.constant 16 : index
    %c0_19 = arith.constant 0 : index
    %19 = vector.load %arg4[%c16_18, %c0_19] : memref<104x256xf32, #tpu.memory_space<vmem>>, vector<8x256xf32>
    %20 = arith.mulf %18, %19 : vector<8x256xf32>
    %c16_20 = arith.constant 16 : index
    %c0_21 = arith.constant 0 : index
    %21 = vector.load %arg9[%c16_20, %c0_21] : memref<104x512xf32, #tpu.memory_space<vmem>>, vector<8x256xf32>
    tpu.vector_store %arg9[%c16_20, %c0_21], %20 {strides = array<i32>} : memref<104x512xf32, #tpu.memory_space<vmem>>, vector<8x256xf32>,
    %c0_22 = arith.constant 0 : index
    %c17 = arith.constant 17 : index
    %22 = vector.load %arg8[%c0_22, %c17] : memref<4x324xf32, #tpu.memory_space<vmem>>, vector<4x256xf32>
    %c0_23 = arith.constant 0 : index
    %c18 = arith.constant 18 : index
    %23 = vector.load %arg8[%c0_23, %c18] : memref<4x324xf32, #tpu.memory_space<vmem>>, vector<4x256xf32>
    %24 = tpu.concatenate %22, %23 in 0 : vector<4x256xf32>, vector<4x256xf32> -> vector<8x256xf32>
    %c24 = arith.constant 24 : index
    %c0_24 = arith.constant 0 : index
    %25 = vector.load %arg4[%c24, %c0_24] : memref<104x256xf32, #tpu.memory_space<vmem>>, vector<8x256xf32>
    %26 = arith.mulf %24, %25 : vector<8x256xf32>
    %c24_25 = arith.constant 24 : index
    %c0_26 = arith.constant 0 : index
    %27 = vector.load %arg9[%c24_25, %c0_26] : memref<104x512xf32, #tpu.memory_space<vmem>>, vector<8x256xf32>
    tpu.vector_store %arg9[%c24_25, %c0_26], %26 {strides = array<i32>} : memref<104x512xf32, #tpu.memory_space<vmem>>, vector<8x256xf32>,
    %c0_27 = arith.constant 0 : index
    %c19 = arith.constant 19 : index
    %28 = vector.load %arg8[%c0_27, %c19] : memref<4x324xf32, #tpu.memory_space<vmem>>, vector<4x256xf32>
    %c0_28 = arith.constant 0 : index
    %c20 = arith.constant 20 : index
    %29 = vector.load %arg8[%c0_28, %c20] : memref<4x324xf32, #tpu.memory_space<vmem>>, vector<4x256xf32>
    %30 = tpu.concatenate %28, %29 in 0 : vector<4x256xf32>, vector<4x256xf32> -> vector<8x256xf32>
    %c32 = arith.constant 32 : index
    %c0_29 = arith.constant 0 : index
    %31 = vector.load %arg4[%c32, %c0_29] : memref<104x256xf32, #tpu.memory_space<vmem>>, vector<8x256xf32>
    %32 = arith.mulf %30, %31 : vector<8x256xf32>
    %c32_30 = arith.constant 32 : index
    %c0_31 = arith.constant 0 : index
    %33 = vector.load %arg9[%c32_30, %c0_31] : memref<104x512xf32, #tpu.memory_space<vmem>>, vector<8x256xf32>
    tpu.vector_store %arg9[%c32_30, %c0_31], %32 {strides = array<i32>} : memref<104x512xf32, #tpu.memory_space<vmem>>, vector<8x256xf32>,
    %c0_32 = arith.constant 0 : index
    %c32_33 = arith.constant 32 : index
    %34 = vector.load %arg8[%c0_32, %c32_33] : memref<4x324xf32, #tpu.memory_space<vmem>>, vector<4x256xf32>
    %c0_34 = arith.constant 0 : index
    %c33 = arith.constant 33 : index
    %35 = vector.load %arg8[%c0_34, %c33] : memref<4x324xf32, #tpu.memory_space<vmem>>, vector<4x256xf32>
    %36 = tpu.concatenate %34, %35 in 0 : vector<4x256xf32>, vector<4x256xf32> -> vector<8x256xf32>
    %c40 = arith.constant 40 : index
    %c0_35 = arith.constant 0 : index
    %37 = vector.load %arg4[%c40, %c0_35] : memref<104x256xf32, #tpu.memory_space<vmem>>, vector<8x256xf32>
    %38 = arith.mulf %36, %37 : vector<8x256xf32>
    %c40_36 = arith.constant 40 : index
    %c0_37 = arith.constant 0 : index
    %39 = vector.load %arg9[%c40_36, %c0_37] : memref<104x512xf32, #tpu.memory_space<vmem>>, vector<8x256xf32>
    tpu.vector_store %arg9[%c40_36, %c0_37], %38 {strides = array<i32>} : memref<104x512xf32, #tpu.memory_space<vmem>>, vector<8x256xf32>,
    %c0_38 = arith.constant 0 : index
    %c34_39 = arith.constant 34 : index
    %40 = vector.load %arg8[%c0_38, %c34_39] : memref<4x324xf32, #tpu.memory_space<vmem>>, vector<4x256xf32>
    %c0_40 = arith.constant 0 : index
    %c35 = arith.constant 35 : index
    %41 = vector.load %arg8[%c0_40, %c35] : memref<4x324xf32, #tpu.memory_space<vmem>>, vector<4x256xf32>
    %42 = tpu.concatenate %40, %41 in 0 : vector<4x256xf32>, vector<4x256xf32> -> vector<8x256xf32>
    %c48 = arith.constant 48 : index
    %c0_41 = arith.constant 0 : index
    %43 = vector.load %arg4[%c48, %c0_41] : memref<104x256xf32, #tpu.memory_space<vmem>>, vector<8x256xf32>
    %44 = arith.mulf %42, %43 : vector<8x256xf32>
    %c48_42 = arith.constant 48 : index
    %c0_43 = arith.constant 0 : index
    %45 = vector.load %arg9[%c48_42, %c0_43] : memref<104x512xf32, #tpu.memory_space<vmem>>, vector<8x256xf32>
    tpu.vector_store %arg9[%c48_42, %c0_43], %44 {strides = array<i32>} : memref<104x512xf32, #tpu.memory_space<vmem>>, vector<8x256xf32>,
    %c0_44 = arith.constant 0 : index
    %c36 = arith.constant 36 : index
    %46 = vector.load %arg8[%c0_44, %c36] : memref<4x324xf32, #tpu.memory_space<vmem>>, vector<4x256xf32>
    %c0_45 = arith.constant 0 : index
    %c48_46 = arith.constant 48 : index
    %47 = vector.load %arg8[%c0_45, %c48_46] : memref<4x324xf32, #tpu.memory_space<vmem>>, vector<4x256xf32>
    %48 = tpu.concatenate %46, %47 in 0 : vector<4x256xf32>, vector<4x256xf32> -> vector<8x256xf32>
    %c56 = arith.constant 56 : index
    %c0_47 = arith.constant 0 : index
    %49 = vector.load %arg4[%c56, %c0_47] : memref<104x256xf32, #tpu.memory_space<vmem>>, vector<8x256xf32>
    %50 = arith.mulf %48, %49 : vector<8x256xf32>
    %c56_48 = arith.constant 56 : index
    %c0_49 = arith.constant 0 : index
    %51 = vector.load %arg9[%c56_48, %c0_49] : memref<104x512xf32, #tpu.memory_space<vmem>>, vector<8x256xf32>
    tpu.vector_store %arg9[%c56_48, %c0_49], %50 {strides = array<i32>} : memref<104x512xf32, #tpu.memory_space<vmem>>, vector<8x256xf32>,
    %c0_50 = arith.constant 0 : index
    %c49 = arith.constant 49 : index
    %52 = vector.load %arg8[%c0_50, %c49] : memref<4x324xf32, #tpu.memory_space<vmem>>, vector<4x256xf32>
    %c0_51 = arith.constant 0 : index
    %c50 = arith.constant 50 : index
    %53 = vector.load %arg8[%c0_51, %c50] : memref<4x324xf32, #tpu.memory_space<vmem>>, vector<4x256xf32>
    %54 = tpu.concatenate %52, %53 in 0 : vector<4x256xf32>, vector<4x256xf32> -> vector<8x256xf32>
    %c64 = arith.constant 64 : index
    %c0_52 = arith.constant 0 : index
    %55 = vector.load %arg4[%c64, %c0_52] : memref<104x256xf32, #tpu.memory_space<vmem>>, vector<8x256xf32>
    %56 = arith.mulf %54, %55 : vector<8x256xf32>
    %c64_53 = arith.constant 64 : index
    %c0_54 = arith.constant 0 : index
    %57 = vector.load %arg9[%c64_53, %c0_54] : memref<104x512xf32, #tpu.memory_space<vmem>>, vector<8x256xf32>
    tpu.vector_store %arg9[%c64_53, %c0_54], %56 {strides = array<i32>} : memref<104x512xf32, #tpu.memory_space<vmem>>, vector<8x256xf32>,
    %c0_55 = arith.constant 0 : index
    %c51 = arith.constant 51 : index
    %58 = vector.load %arg8[%c0_55, %c51] : memref<4x324xf32, #tpu.memory_space<vmem>>, vector<4x256xf32>
    %c0_56 = arith.constant 0 : index
    %c52 = arith.constant 52 : index
    %59 = vector.load %arg8[%c0_56, %c52] : memref<4x324xf32, #tpu.memory_space<vmem>>, vector<4x256xf32>
    %60 = tpu.concatenate %58, %59 in 0 : vector<4x256xf32>, vector<4x256xf32> -> vector<8x256xf32>
    %c72 = arith.constant 72 : index
    %c0_57 = arith.constant 0 : index
    %61 = vector.load %arg4[%c72, %c0_57] : memref<104x256xf32, #tpu.memory_space<vmem>>, vector<8x256xf32>
    %62 = arith.mulf %60, %61 : vector<8x256xf32>
    %c72_58 = arith.constant 72 : index
    %c0_59 = arith.constant 0 : index
    %63 = vector.load %arg9[%c72_58, %c0_59] : memref<104x512xf32, #tpu.memory_space<vmem>>, vector<8x256xf32>
    tpu.vector_store %arg9[%c72_58, %c0_59], %62 {strides = array<i32>} : memref<104x512xf32, #tpu.memory_space<vmem>>, vector<8x256xf32>,
    %c0_60 = arith.constant 0 : index
    %c64_61 = arith.constant 64 : index
    %64 = vector.load %arg8[%c0_60, %c64_61] : memref<4x324xf32, #tpu.memory_space<vmem>>, vector<4x256xf32>
    %c0_62 = arith.constant 0 : index
    %c65 = arith.constant 65 : index
    %65 = vector.load %arg8[%c0_62, %c65] : memref<4x324xf32, #tpu.memory_space<vmem>>, vector<4x256xf32>
    %66 = tpu.concatenate %64, %65 in 0 : vector<4x256xf32>, vector<4x256xf32> -> vector<8x256xf32>
    %c80 = arith.constant 80 : index
    %c0_63 = arith.constant 0 : index
    %67 = vector.load %arg4[%c80, %c0_63] : memref<104x256xf32, #tpu.memory_space<vmem>>, vector<8x256xf32>
    %68 = arith.mulf %66, %67 : vector<8x256xf32>
    %c80_64 = arith.constant 80 : index
    %c0_65 = arith.constant 0 : index
    %69 = vector.load %arg9[%c80_64, %c0_65] : memref<104x512xf32, #tpu.memory_space<vmem>>, vector<8x256xf32>
    tpu.vector_store %arg9[%c80_64, %c0_65], %68 {strides = array<i32>} : memref<104x512xf32, #tpu.memory_space<vmem>>, vector<8x256xf32>,
    %c0_66 = arith.constant 0 : index
    %c66 = arith.constant 66 : index
    %70 = vector.load %arg8[%c0_66, %c66] : memref<4x324xf32, #tpu.memory_space<vmem>>, vector<4x256xf32>
    %c0_67 = arith.constant 0 : index
    %c67 = arith.constant 67 : index
    %71 = vector.load %arg8[%c0_67, %c67] : memref<4x324xf32, #tpu.memory_space<vmem>>, vector<4x256xf32>
    %72 = tpu.concatenate %70, %71 in 0 : vector<4x256xf32>, vector<4x256xf32> -> vector<8x256xf32>
    %c88 = arith.constant 88 : index
    %c0_68 = arith.constant 0 : index
    %73 = vector.load %arg4[%c88, %c0_68] : memref<104x256xf32, #tpu.memory_space<vmem>>, vector<8x256xf32>
    %74 = arith.mulf %72, %73 : vector<8x256xf32>
    %c88_69 = arith.constant 88 : index
    %c0_70 = arith.constant 0 : index
    %75 = vector.load %arg9[%c88_69, %c0_70] : memref<104x512xf32, #tpu.memory_space<vmem>>, vector<8x256xf32>
    tpu.vector_store %arg9[%c88_69, %c0_70], %74 {strides = array<i32>} : memref<104x512xf32, #tpu.memory_space<vmem>>, vector<8x256xf32>,
    %c0_71 = arith.constant 0 : index
    %c68 = arith.constant 68 : index
    %76 = vector.load %arg8[%c0_71, %c68] : memref<4x324xf32, #tpu.memory_space<vmem>>, vector<4x256xf32>
    %cst_72 = arith.constant 0.000000e+00 : f32
    %77 = vector.broadcast %cst_72 : f32 to vector<4x256xf32>
    %78 = tpu.concatenate %76, %77 in 0 : vector<4x256xf32>, vector<4x256xf32> -> vector<8x256xf32>
    %c96 = arith.constant 96 : index
    %c0_73 = arith.constant 0 : index
    %79 = vector.load %arg4[%c96, %c0_73] : memref<104x256xf32, #tpu.memory_space<vmem>>, vector<8x256xf32>
    %80 = arith.mulf %78, %79 : vector<8x256xf32>
    %c96_74 = arith.constant 96 : index
    %c0_75 = arith.constant 0 : index
    %81 = vector.load %arg9[%c96_74, %c0_75] : memref<104x512xf32, #tpu.memory_space<vmem>>, vector<8x256xf32>
    tpu.vector_store %arg9[%c96_74, %c0_75], %80 {strides = array<i32>} : memref<104x512xf32, #tpu.memory_space<vmem>>, vector<8x256xf32>,
    %c4_76 = arith.constant 4 : index
    %c0_77 = arith.constant 0 : index
    %82 = vector.load %arg1[%c4_76, %c0_77] : memref<8x256xf32, #tpu.memory_space<vmem>>, vector<4x256xf32>
    %c0_78 = arith.constant 0 : index
    %c34_79 = arith.constant 34 : index
    %83 = vector.load %arg8[%c0_78, %c34_79] : memref<4x324xf32, #tpu.memory_space<vmem>>, vector<4x256xf32>
    tpu.vector_store %arg8[%c0_78, %c34_79], %82 {strides = array<i32>} : memref<4x324xf32, #tpu.memory_space<vmem>>, vector<4x256xf32>,
    %c0_80 = arith.constant 0 : index
    %c0_81 = arith.constant 0 : index
    %84 = vector.load %arg8[%c0_80, %c0_81] : memref<4x324xf32, #tpu.memory_space<vmem>>, vector<4x256xf32>
    %c0_82 = arith.constant 0 : index
    %c1_83 = arith.constant 1 : index
    %85 = vector.load %arg8[%c0_82, %c1_83] : memref<4x324xf32, #tpu.memory_space<vmem>>, vector<4x256xf32>
    %86 = tpu.concatenate %84, %85 in 0 : vector<4x256xf32>, vector<4x256xf32> -> vector<8x256xf32>
    %c0_84 = arith.constant 0 : index
    %c0_85 = arith.constant 0 : index
    %87 = vector.load %arg4[%c0_84, %c0_85] : memref<104x256xf32, #tpu.memory_space<vmem>>, vector<8x256xf32>
    %88 = arith.mulf %86, %87 : vector<8x256xf32>
    %c0_86 = arith.constant 0 : index
    %c256 = arith.constant 256 : index
    %89 = vector.load %arg9[%c0_86, %c256] : memref<104x512xf32, #tpu.memory_space<vmem>>, vector<8x256xf32>
    tpu.vector_store %arg9[%c0_86, %c256], %88 {strides = array<i32>} : memref<104x512xf32, #tpu.memory_space<vmem>>, vector<8x256xf32>,
    %c0_87 = arith.constant 0 : index
    %c2_88 = arith.constant 2 : index
    %90 = vector.load %arg8[%c0_87, %c2_88] : memref<4x324xf32, #tpu.memory_space<vmem>>, vector<4x256xf32>
    %c0_89 = arith.constant 0 : index
    %c3_90 = arith.constant 3 : index
    %91 = vector.load %arg8[%c0_89, %c3_90] : memref<4x324xf32, #tpu.memory_space<vmem>>, vector<4x256xf32>
    %92 = tpu.concatenate %90, %91 in 0 : vector<4x256xf32>, vector<4x256xf32> -> vector<8x256xf32>
    %c8_91 = arith.constant 8 : index
    %c0_92 = arith.constant 0 : index
    %93 = vector.load %arg4[%c8_91, %c0_92] : memref<104x256xf32, #tpu.memory_space<vmem>>, vector<8x256xf32>
    %94 = arith.mulf %92, %93 : vector<8x256xf32>
    %c8_93 = arith.constant 8 : index
    %c256_94 = arith.constant 256 : index
    %95 = vector.load %arg9[%c8_93, %c256_94] : memref<104x512xf32, #tpu.memory_space<vmem>>, vector<8x256xf32>
    tpu.vector_store %arg9[%c8_93, %c256_94], %94 {strides = array<i32>} : memref<104x512xf32, #tpu.memory_space<vmem>>, vector<8x256xf32>,
    %c0_95 = arith.constant 0 : index
    %c4_96 = arith.constant 4 : index
    %96 = vector.load %arg8[%c0_95, %c4_96] : memref<4x324xf32, #tpu.memory_space<vmem>>, vector<4x256xf32>
    %c0_97 = arith.constant 0 : index
    %c16_98 = arith.constant 16 : index
    %97 = vector.load %arg8[%c0_97, %c16_98] : memref<4x324xf32, #tpu.memory_space<vmem>>, vector<4x256xf32>
    %98 = tpu.concatenate %96, %97 in 0 : vector<4x256xf32>, vector<4x256xf32> -> vector<8x256xf32>
    %c16_99 = arith.constant 16 : index
    %c0_100 = arith.constant 0 : index
    %99 = vector.load %arg4[%c16_99, %c0_100] : memref<104x256xf32, #tpu.memory_space<vmem>>, vector<8x256xf32>
    %100 = arith.mulf %98, %99 : vector<8x256xf32>
    %c16_101 = arith.constant 16 : index
    %c256_102 = arith.constant 256 : index
    %101 = vector.load %arg9[%c16_101, %c256_102] : memref<104x512xf32, #tpu.memory_space<vmem>>, vector<8x256xf32>
    tpu.vector_store %arg9[%c16_101, %c256_102], %100 {strides = array<i32>} : memref<104x512xf32, #tpu.memory_space<vmem>>, vector<8x256xf32>,
    %c0_103 = arith.constant 0 : index
    %c17_104 = arith.constant 17 : index
    %102 = vector.load %arg8[%c0_103, %c17_104] : memref<4x324xf32, #tpu.memory_space<vmem>>, vector<4x256xf32>
    %c0_105 = arith.constant 0 : index
    %c18_106 = arith.constant 18 : index
    %103 = vector.load %arg8[%c0_105, %c18_106] : memref<4x324xf32, #tpu.memory_space<vmem>>, vector<4x256xf32>
    %104 = tpu.concatenate %102, %103 in 0 : vector<4x256xf32>, vector<4x256xf32> -> vector<8x256xf32>
    %c24_107 = arith.constant 24 : index
    %c0_108 = arith.constant 0 : index
    %105 = vector.load %arg4[%c24_107, %c0_108] : memref<104x256xf32, #tpu.memory_space<vmem>>, vector<8x256xf32>
    %106 = arith.mulf %104, %105 : vector<8x256xf32>
    %c24_109 = arith.constant 24 : index
    %c256_110 = arith.constant 256 : index
    %107 = vector.load %arg9[%c24_109, %c256_110] : memref<104x512xf32, #tpu.memory_space<vmem>>, vector<8x256xf32>
    tpu.vector_store %arg9[%c24_109, %c256_110], %106 {strides = array<i32>} : memref<104x512xf32, #tpu.memory_space<vmem>>, vector<8x256xf32>,
    %c0_111 = arith.constant 0 : index
    %c19_112 = arith.constant 19 : index
    %108 = vector.load %arg8[%c0_111, %c19_112] : memref<4x324xf32, #tpu.memory_space<vmem>>, vector<4x256xf32>
    %c0_113 = arith.constant 0 : index
    %c20_114 = arith.constant 20 : index
    %109 = vector.load %arg8[%c0_113, %c20_114] : memref<4x324xf32, #tpu.memory_space<vmem>>, vector<4x256xf32>
    %110 = tpu.concatenate %108, %109 in 0 : vector<4x256xf32>, vector<4x256xf32> -> vector<8x256xf32>
    %c32_115 = arith.constant 32 : index
    %c0_116 = arith.constant 0 : index
    %111 = vector.load %arg4[%c32_115, %c0_116] : memref<104x256xf32, #tpu.memory_space<vmem>>, vector<8x256xf32>
    %112 = arith.mulf %110, %111 : vector<8x256xf32>
    %c32_117 = arith.constant 32 : index
    %c256_118 = arith.constant 256 : index
    %113 = vector.load %arg9[%c32_117, %c256_118] : memref<104x512xf32, #tpu.memory_space<vmem>>, vector<8x256xf32>
    tpu.vector_store %arg9[%c32_117, %c256_118], %112 {strides = array<i32>} : memref<104x512xf32, #tpu.memory_space<vmem>>, vector<8x256xf32>,
    %c0_119 = arith.constant 0 : index
    %c32_120 = arith.constant 32 : index
    %114 = vector.load %arg8[%c0_119, %c32_120] : memref<4x324xf32, #tpu.memory_space<vmem>>, vector<4x256xf32>
    %c0_121 = arith.constant 0 : index
    %c33_122 = arith.constant 33 : index
    %115 = vector.load %arg8[%c0_121, %c33_122] : memref<4x324xf32, #tpu.memory_space<vmem>>, vector<4x256xf32>
    %116 = tpu.concatenate %114, %115 in 0 : vector<4x256xf32>, vector<4x256xf32> -> vector<8x256xf32>
    %c40_123 = arith.constant 40 : index
    %c0_124 = arith.constant 0 : index
    %117 = vector.load %arg4[%c40_123, %c0_124] : memref<104x256xf32, #tpu.memory_space<vmem>>, vector<8x256xf32>
    %118 = arith.mulf %116, %117 : vector<8x256xf32>
    %c40_125 = arith.constant 40 : index
    %c256_126 = arith.constant 256 : index
    %119 = vector.load %arg9[%c40_125, %c256_126] : memref<104x512xf32, #tpu.memory_space<vmem>>, vector<8x256xf32>
    tpu.vector_store %arg9[%c40_125, %c256_126], %118 {strides = array<i32>} : memref<104x512xf32, #tpu.memory_space<vmem>>, vector<8x256xf32>,
    %c0_127 = arith.constant 0 : index
    %c34_128 = arith.constant 34 : index
    %120 = vector.load %arg8[%c0_127, %c34_128] : memref<4x324xf32, #tpu.memory_space<vmem>>, vector<4x256xf32>
    %c0_129 = arith.constant 0 : index
    %c35_130 = arith.constant 35 : index
    %121 = vector.load %arg8[%c0_129, %c35_130] : memref<4x324xf32, #tpu.memory_space<vmem>>, vector<4x256xf32>
    %122 = tpu.concatenate %120, %121 in 0 : vector<4x256xf32>, vector<4x256xf32> -> vector<8x256xf32>
    %c48_131 = arith.constant 48 : index
    %c0_132 = arith.constant 0 : index
    %123 = vector.load %arg4[%c48_131, %c0_132] : memref<104x256xf32, #tpu.memory_space<vmem>>, vector<8x256xf32>
    %124 = arith.mulf %122, %123 : vector<8x256xf32>
    %c48_133 = arith.constant 48 : index
    %c256_134 = arith.constant 256 : index
    %125 = vector.load %arg9[%c48_133, %c256_134] : memref<104x512xf32, #tpu.memory_space<vmem>>, vector<8x256xf32>
    tpu.vector_store %arg9[%c48_133, %c256_134], %124 {strides = array<i32>} : memref<104x512xf32, #tpu.memory_space<vmem>>, vector<8x256xf32>,
    %c0_135 = arith.constant 0 : index
    %c36_136 = arith.constant 36 : index
    %126 = vector.load %arg8[%c0_135, %c36_136] : memref<4x324xf32, #tpu.memory_space<vmem>>, vector<4x256xf32>
    %c0_137 = arith.constant 0 : index
    %c48_138 = arith.constant 48 : index
    %127 = vector.load %arg8[%c0_137, %c48_138] : memref<4x324xf32, #tpu.memory_space<vmem>>, vector<4x256xf32>
    %128 = tpu.concatenate %126, %127 in 0 : vector<4x256xf32>, vector<4x256xf32> -> vector<8x256xf32>
    %c56_139 = arith.constant 56 : index
    %c0_140 = arith.constant 0 : index
    %129 = vector.load %arg4[%c56_139, %c0_140] : memref<104x256xf32, #tpu.memory_space<vmem>>, vector<8x256xf32>
    %130 = arith.mulf %128, %129 : vector<8x256xf32>
    %c56_141 = arith.constant 56 : index
    %c256_142 = arith.constant 256 : index
    %131 = vector.load %arg9[%c56_141, %c256_142] : memref<104x512xf32, #tpu.memory_space<vmem>>, vector<8x256xf32>
    tpu.vector_store %arg9[%c56_141, %c256_142], %130 {strides = array<i32>} : memref<104x512xf32, #tpu.memory_space<vmem>>, vector<8x256xf32>,
    %c0_143 = arith.constant 0 : index
    %c49_144 = arith.constant 49 : index
    %132 = vector.load %arg8[%c0_143, %c49_144] : memref<4x324xf32, #tpu.memory_space<vmem>>, vector<4x256xf32>
    %c0_145 = arith.constant 0 : index
    %c50_146 = arith.constant 50 : index
    %133 = vector.load %arg8[%c0_145, %c50_146] : memref<4x324xf32, #tpu.memory_space<vmem>>, vector<4x256xf32>
    %134 = tpu.concatenate %132, %133 in 0 : vector<4x256xf32>, vector<4x256xf32> -> vector<8x256xf32>
    %c64_147 = arith.constant 64 : index
    %c0_148 = arith.constant 0 : index
    %135 = vector.load %arg4[%c64_147, %c0_148] : memref<104x256xf32, #tpu.memory_space<vmem>>, vector<8x256xf32>
    %136 = arith.mulf %134, %135 : vector<8x256xf32>
    %c64_149 = arith.constant 64 : index
    %c256_150 = arith.constant 256 : index
    %137 = vector.load %arg9[%c64_149, %c256_150] : memref<104x512xf32, #tpu.memory_space<vmem>>, vector<8x256xf32>
    tpu.vector_store %arg9[%c64_149, %c256_150], %136 {strides = array<i32>} : memref<104x512xf32, #tpu.memory_space<vmem>>, vector<8x256xf32>,
    %c0_151 = arith.constant 0 : index
    %c51_152 = arith.constant 51 : index
    %138 = vector.load %arg8[%c0_151, %c51_152] : memref<4x324xf32, #tpu.memory_space<vmem>>, vector<4x256xf32>
    %c0_153 = arith.constant 0 : index
    %c52_154 = arith.constant 52 : index
    %139 = vector.load %arg8[%c0_153, %c52_154] : memref<4x324xf32, #tpu.memory_space<vmem>>, vector<4x256xf32>
    %140 = tpu.concatenate %138, %139 in 0 : vector<4x256xf32>, vector<4x256xf32> -> vector<8x256xf32>
    %c72_155 = arith.constant 72 : index
    %c0_156 = arith.constant 0 : index
    %141 = vector.load %arg4[%c72_155, %c0_156] : memref<104x256xf32, #tpu.memory_space<vmem>>, vector<8x256xf32>
    %142 = arith.mulf %140, %141 : vector<8x256xf32>
    %c72_157 = arith.constant 72 : index
    %c256_158 = arith.constant 256 : index
    %143 = vector.load %arg9[%c72_157, %c256_158] : memref<104x512xf32, #tpu.memory_space<vmem>>, vector<8x256xf32>
    tpu.vector_store %arg9[%c72_157, %c256_158], %142 {strides = array<i32>} : memref<104x512xf32, #tpu.memory_space<vmem>>, vector<8x256xf32>,
    %c0_159 = arith.constant 0 : index
    %c64_160 = arith.constant 64 : index
    %144 = vector.load %arg8[%c0_159, %c64_160] : memref<4x324xf32, #tpu.memory_space<vmem>>, vector<4x256xf32>
    %c0_161 = arith.constant 0 : index
    %c65_162 = arith.constant 65 : index
    %145 = vector.load %arg8[%c0_161, %c65_162] : memref<4x324xf32, #tpu.memory_space<vmem>>, vector<4x256xf32>
    %146 = tpu.concatenate %144, %145 in 0 : vector<4x256xf32>, vector<4x256xf32> -> vector<8x256xf32>
    %c80_163 = arith.constant 80 : index
    %c0_164 = arith.constant 0 : index
    %147 = vector.load %arg4[%c80_163, %c0_164] : memref<104x256xf32, #tpu.memory_space<vmem>>, vector<8x256xf32>
    %148 = arith.mulf %146, %147 : vector<8x256xf32>
    %c80_165 = arith.constant 80 : index
    %c256_166 = arith.constant 256 : index
    %149 = vector.load %arg9[%c80_165, %c256_166] : memref<104x512xf32, #tpu.memory_space<vmem>>, vector<8x256xf32>
    tpu.vector_store %arg9[%c80_165, %c256_166], %148 {strides = array<i32>} : memref<104x512xf32, #tpu.memory_space<vmem>>, vector<8x256xf32>,
    %c0_167 = arith.constant 0 : index
    %c66_168 = arith.constant 66 : index
    %150 = vector.load %arg8[%c0_167, %c66_168] : memref<4x324xf32, #tpu.memory_space<vmem>>, vector<4x256xf32>
    %c0_169 = arith.constant 0 : index
    %c67_170 = arith.constant 67 : index
    %151 = vector.load %arg8[%c0_169, %c67_170] : memref<4x324xf32, #tpu.memory_space<vmem>>, vector<4x256xf32>
    %152 = tpu.concatenate %150, %151 in 0 : vector<4x256xf32>, vector<4x256xf32> -> vector<8x256xf32>
    %c88_171 = arith.constant 88 : index
    %c0_172 = arith.constant 0 : index
    %153 = vector.load %arg4[%c88_171, %c0_172] : memref<104x256xf32, #tpu.memory_space<vmem>>, vector<8x256xf32>
    %154 = arith.mulf %152, %153 : vector<8x256xf32>
    %c88_173 = arith.constant 88 : index
    %c256_174 = arith.constant 256 : index
    %155 = vector.load %arg9[%c88_173, %c256_174] : memref<104x512xf32, #tpu.memory_space<vmem>>, vector<8x256xf32>
    tpu.vector_store %arg9[%c88_173, %c256_174], %154 {strides = array<i32>} : memref<104x512xf32, #tpu.memory_space<vmem>>, vector<8x256xf32>,
    %c0_175 = arith.constant 0 : index
    %c68_176 = arith.constant 68 : index
    %156 = vector.load %arg8[%c0_175, %c68_176] : memref<4x324xf32, #tpu.memory_space<vmem>>, vector<4x256xf32>
    %cst_177 = arith.constant 0.000000e+00 : f32
    %157 = vector.broadcast %cst_177 : f32 to vector<4x256xf32>
    %158 = tpu.concatenate %156, %157 in 0 : vector<4x256xf32>, vector<4x256xf32> -> vector<8x256xf32>
    %c96_178 = arith.constant 96 : index
    %c0_179 = arith.constant 0 : index
    %159 = vector.load %arg4[%c96_178, %c0_179] : memref<104x256xf32, #tpu.memory_space<vmem>>, vector<8x256xf32>
    %160 = arith.mulf %158, %159 : vector<8x256xf32>
    %c96_180 = arith.constant 96 : index
    %c256_181 = arith.constant 256 : index
    %161 = vector.load %arg9[%c96_180, %c256_181] : memref<104x512xf32, #tpu.memory_space<vmem>>, vector<8x256xf32>
    tpu.vector_store %arg9[%c96_180, %c256_181], %160 {strides = array<i32>} : memref<104x512xf32, #tpu.memory_space<vmem>>, vector<8x256xf32>,
    %c0_182 = arith.constant 0 : index
    %c0_183 = arith.constant 0 : index
    %162 = vector.load %arg2[%c0_182, %c0_183] : memref<16x104xf32, #tpu.memory_space<vmem>>, vector<16x104xf32>
    %c0_184 = arith.constant 0 : index
    %c0_185 = arith.constant 0 : index
    %163 = vector.load %arg9[%c0_184, %c0_185] : memref<104x512xf32, #tpu.memory_space<vmem>>, vector<104x512xf32>
    %cst_186 = arith.constant dense<0.000000e+00> : vector<16x512xf32>
    %164 = tpu.matmul %162, %163, %cst_186 {dimension_numbers = #tpu.dot_dimension_numbers<[1], [0], [0], [1], [0, 0, 1, 1], [], []>} : vector<16x104xf32>, vector<104x512xf32>, vector<16x512xf32> -> vector<16x512xf32>
    %c0_187 = arith.constant 0 : index
    %c0_188 = arith.constant 0 : index
    %165 = vector.load %arg3[%c0_187, %c0_188] : memref<16x1xf32, #tpu.memory_space<vmem>>, vector<16x1xf32>
    %166 = vector.broadcast %165 : vector<16x1xf32> to vector<16x512xf32>
    %167 = arith.addf %164, %166 : vector<16x512xf32>
    %c0_189 = arith.constant 0 : index
    %c0_190 = arith.constant 0 : index
    %168 = vector.load %arg10[%c0_189, %c0_190] : memref<16x512xf32, #tpu.memory_space<vmem>>, vector<16x512xf32>
    tpu.vector_store %arg10[%c0_189, %c0_190], %167 {strides = array<i32>} : memref<16x512xf32, #tpu.memory_space<vmem>>, vector<16x512xf32>,
    %c0_191 = arith.constant 0 : index
    %c0_192 = arith.constant 0 : index
    %169 = vector.load %arg10[%c0_191, %c0_192] : memref<16x512xf32, #tpu.memory_space<vmem>>, vector<16x256xf32>
    %cst_193 = arith.constant dense<0.000000e+00> : vector<16xf32>
    %170 = vector.multi_reduction <add>, %169, %cst_193 [1] : vector<16x256xf32> to vector<16xf32>
    %171 = vector.shape_cast %170 : vector<16xf32> to vector<16x1xf32>
    %cst_194 = arith.constant 2.560000e+02 : f32
    %172 = vector.broadcast %cst_194 : f32 to vector<16x1xf32>
    %173 = arith.divf %171, %172 : vector<16x1xf32>
    %174 = vector.broadcast %173 : vector<16x1xf32> to vector<16x256xf32>
    %175 = arith.subf %169, %174 : vector<16x256xf32>
    %176 = arith.mulf %175, %175 : vector<16x256xf32>
    %cst_195 = arith.constant dense<0.000000e+00> : vector<16xf32>
    %177 = vector.multi_reduction <add>, %176, %cst_195 [1] : vector<16x256xf32> to vector<16xf32>
    %178 = vector.shape_cast %177 : vector<16xf32> to vector<16x1xf32>
    %cst_196 = arith.constant 2.560000e+02 : f32
    %179 = vector.broadcast %cst_196 : f32 to vector<16x1xf32>
    %180 = arith.divf %178, %179 : vector<16x1xf32>
    %181 = vector.broadcast %173 : vector<16x1xf32> to vector<16x256xf32>
    %182 = arith.subf %169, %181 : vector<16x256xf32>
    %cst_197 = arith.constant 9.99999974E-6 : f32
    %183 = vector.broadcast %cst_197 : f32 to vector<16x1xf32>
    %184 = arith.addf %180, %183 : vector<16x1xf32>
    %185 = math.rsqrt %184 : vector<16x1xf32>
    %186 = vector.broadcast %185 : vector<16x1xf32> to vector<16x256xf32>
    %187 = arith.mulf %182, %186 : vector<16x256xf32>
    %cst_198 = arith.constant 0.000000e+00 : f32
    %188 = vector.broadcast %cst_198 : f32 to vector<16x256xf32>
    %189 = arith.cmpf ogt, %187, %188 : vector<16x256xf32>
    %cst_199 = arith.constant 0.00999999977 : f32
    %190 = vector.broadcast %cst_199 : f32 to vector<16x256xf32>
    %191 = arith.mulf %190, %187 : vector<16x256xf32>
    %192 = arith.select %189, %187, %191 : vector<16x256xi1>, vector<16x256xf32>
    %c0_200 = arith.constant 0 : index
    %c0_201 = arith.constant 0 : index
    %193 = vector.load %arg10[%c0_200, %c0_201] : memref<16x512xf32, #tpu.memory_space<vmem>>, vector<16x256xf32>
    tpu.vector_store %arg10[%c0_200, %c0_201], %192 {strides = array<i32>} : memref<16x512xf32, #tpu.memory_space<vmem>>, vector<16x256xf32>,
    %194 = vector.extract_strided_slice %192 {offsets = [0, 0], sizes = [8, 256], strides = [1, 1]} : vector<16x256xf32> to vector<8x256xf32>
    %195 = vector.extract_strided_slice %192 {offsets = [8, 0], sizes = [8, 256], strides = [1, 1]} : vector<16x256xf32> to vector<8x256xf32>
    %196 = arith.addf %194, %195 : vector<8x256xf32>
    %cst_202 = arith.constant dense<0.000000e+00> : vector<8xf32>
    %197 = vector.multi_reduction <add>, %196, %cst_202 [1] : vector<8x256xf32> to vector<8xf32>
    %198 = vector.shape_cast %197 : vector<8xf32> to vector<8x1xf32>
    %cst_203 = arith.constant 2.560000e+02 : f32
    %199 = vector.broadcast %cst_203 : f32 to vector<8x1xf32>
    %200 = arith.divf %198, %199 : vector<8x1xf32>
    %c0_204 = arith.constant 0 : index
    %c256_205 = arith.constant 256 : index
    %201 = vector.load %arg10[%c0_204, %c256_205] : memref<16x512xf32, #tpu.memory_space<vmem>>, vector<16x256xf32>
    %cst_206 = arith.constant dense<0.000000e+00> : vector<16xf32>
    %202 = vector.multi_reduction <add>, %201, %cst_206 [1] : vector<16x256xf32> to vector<16xf32>
    %203 = vector.shape_cast %202 : vector<16xf32> to vector<16x1xf32>
    %cst_207 = arith.constant 2.560000e+02 : f32
    %204 = vector.broadcast %cst_207 : f32 to vector<16x1xf32>
    %205 = arith.divf %203, %204 : vector<16x1xf32>
    %206 = vector.broadcast %205 : vector<16x1xf32> to vector<16x256xf32>
    %207 = arith.subf %201, %206 : vector<16x256xf32>
    %208 = arith.mulf %207, %207 : vector<16x256xf32>
    %cst_208 = arith.constant dense<0.000000e+00> : vector<16xf32>
    %209 = vector.multi_reduction <add>, %208, %cst_208 [1] : vector<16x256xf32> to vector<16xf32>
    %210 = vector.shape_cast %209 : vector<16xf32> to vector<16x1xf32>
    %cst_209 = arith.constant 2.560000e+02 : f32
    %211 = vector.broadcast %cst_209 : f32 to vector<16x1xf32>
    %212 = arith.divf %210, %211 : vector<16x1xf32>
    %213 = vector.broadcast %205 : vector<16x1xf32> to vector<16x256xf32>
    %214 = arith.subf %201, %213 : vector<16x256xf32>
    %cst_210 = arith.constant 9.99999974E-6 : f32
    %215 = vector.broadcast %cst_210 : f32 to vector<16x1xf32>
    %216 = arith.addf %212, %215 : vector<16x1xf32>
    %217 = math.rsqrt %216 : vector<16x1xf32>
    %218 = vector.broadcast %217 : vector<16x1xf32> to vector<16x256xf32>
    %219 = arith.mulf %214, %218 : vector<16x256xf32>
    %cst_211 = arith.constant 0.000000e+00 : f32
    %220 = vector.broadcast %cst_211 : f32 to vector<16x256xf32>
    %221 = arith.cmpf ogt, %219, %220 : vector<16x256xf32>
    %cst_212 = arith.constant 0.00999999977 : f32
    %222 = vector.broadcast %cst_212 : f32 to vector<16x256xf32>
    %223 = arith.mulf %222, %219 : vector<16x256xf32>
    %224 = arith.select %221, %219, %223 : vector<16x256xi1>, vector<16x256xf32>
    %c0_213 = arith.constant 0 : index
    %c256_214 = arith.constant 256 : index
    %225 = vector.load %arg10[%c0_213, %c256_214] : memref<16x512xf32, #tpu.memory_space<vmem>>, vector<16x256xf32>
    tpu.vector_store %arg10[%c0_213, %c256_214], %224 {strides = array<i32>} : memref<16x512xf32, #tpu.memory_space<vmem>>, vector<16x256xf32>,
    %226 = vector.extract_strided_slice %224 {offsets = [0, 0], sizes = [8, 256], strides = [1, 1]} : vector<16x256xf32> to vector<8x256xf32>
    %227 = vector.extract_strided_slice %224 {offsets = [8, 0], sizes = [8, 256], strides = [1, 1]} : vector<16x256xf32> to vector<8x256xf32>
    %228 = arith.addf %226, %227 : vector<8x256xf32>
    %cst_215 = arith.constant dense<0.000000e+00> : vector<8xf32>
    %229 = vector.multi_reduction <add>, %228, %cst_215 [1] : vector<8x256xf32> to vector<8xf32>
    %230 = vector.shape_cast %229 : vector<8xf32> to vector<8x1xf32>
    %cst_216 = arith.constant 2.560000e+02 : f32
    %231 = vector.broadcast %cst_216 : f32 to vector<8x1xf32>
    %232 = arith.divf %230, %231 : vector<8x1xf32>
    %cst_217 = arith.constant 0.000000e+00 : f32
    %233 = vector.broadcast %cst_217 : f32 to vector<8x6xf32>
    %234 = tpu.concatenate %200, %232, %233 in 1 : vector<8x1xf32>, vector<8x1xf32>, vector<8x6xf32> -> vector<8x8xf32>
    %c0_218 = arith.constant 0 : index
    %c0_219 = arith.constant 0 : index
    %235 = vector.load %arg5[%c0_218, %c0_219] : memref<32x8xf32, #tpu.memory_space<vmem>>, vector<32x8xf32>
    %cst_220 = arith.constant dense<0.000000e+00> : vector<32x8xf32>
    %236 = tpu.matmul %235, %234, %cst_220 {dimension_numbers = #tpu.dot_dimension_numbers<[1], [0], [0], [1], [0, 0, 1, 1], [], []>} : vector<32x8xf32>, vector<8x8xf32>, vector<32x8xf32> -> vector<32x8xf32>
    %cst_221 = arith.constant 0.000000e+00 : f32
    %237 = vector.broadcast %cst_221 : f32 to vector<32x8xf32>
    %238 = arith.maximumf %236, %237 : vector<32x8xf32>
    %c0_222 = arith.constant 0 : index
    %c0_223 = arith.constant 0 : index
    %239 = vector.load %arg6[%c0_222, %c0_223] : memref<16x32xf32, #tpu.memory_space<vmem>>, vector<16x32xf32>
    %cst_224 = arith.constant dense<0.000000e+00> : vector<16x8xf32>
    %240 = tpu.matmul %239, %238, %cst_224 {dimension_numbers = #tpu.dot_dimension_numbers<[1], [0], [0], [1], [0, 0, 1, 1], [], []>} : vector<16x32xf32>, vector<32x8xf32>, vector<16x8xf32> -> vector<16x8xf32>
    %241 = vector.extract_strided_slice %240 {offsets = [0, 0], sizes = [8, 8], strides = [1, 1]} : vector<16x8xf32> to vector<8x8xf32>
    %242 = vector.extract_strided_slice %240 {offsets = [8, 0], sizes = [8, 8], strides = [1, 1]} : vector<16x8xf32> to vector<8x8xf32>
    %243 = arith.maximumf %241, %242 : vector<8x8xf32>
    %244 = arith.subf %241, %243 : vector<8x8xf32>
    %245 = math.exp %244 : vector<8x8xf32>
    %246 = arith.subf %242, %243 : vector<8x8xf32>
    %247 = math.exp %246 : vector<8x8xf32>
    %248 = arith.addf %245, %247 : vector<8x8xf32>
    %cst_225 = arith.constant 1.000000e+00 : f32
    %249 = vector.broadcast %cst_225 : f32 to vector<8x8xf32>
    %250 = arith.divf %249, %248 : vector<8x8xf32>
    %251 = arith.mulf %245, %250 : vector<8x8xf32>
    %252 = arith.mulf %247, %250 : vector<8x8xf32>
    %c0_226 = arith.constant 0 : index
    %c0_227 = arith.constant 0 : index
    %253 = vector.load %arg10[%c0_226, %c0_227] : memref<16x512xf32, #tpu.memory_space<vmem>>, vector<16x256xf32>
    %254 = vector.extract_strided_slice %253 {offsets = [0, 0], sizes = [8, 256], strides = [1, 1]} : vector<16x256xf32> to vector<8x256xf32>
    %255 = vector.extract_strided_slice %251 {offsets = [0, 0], sizes = [8, 1], strides = [1, 1]} : vector<8x8xf32> to vector<8x1xf32>
    %256 = vector.broadcast %255 : vector<8x1xf32> to vector<8x256xf32>
    %257 = arith.mulf %254, %256 : vector<8x256xf32>
    %258 = vector.extract_strided_slice %253 {offsets = [8, 0], sizes = [8, 256], strides = [1, 1]} : vector<16x256xf32> to vector<8x256xf32>
    %259 = vector.extract_strided_slice %252 {offsets = [0, 0], sizes = [8, 1], strides = [1, 1]} : vector<8x8xf32> to vector<8x1xf32>
    %260 = vector.broadcast %259 : vector<8x1xf32> to vector<8x256xf32>
    %261 = arith.mulf %258, %260 : vector<8x256xf32>
    %262 = arith.addf %257, %261 : vector<8x256xf32>
    %c0_228 = arith.constant 0 : index
    %c0_229 = arith.constant 0 : index
    %263 = vector.load %arg7[%c0_228, %c0_229] : memref<16x256xf32, #tpu.memory_space<vmem>>, vector<8x256xf32>
    tpu.vector_store %arg7[%c0_228, %c0_229], %262 {strides = array<i32>} : memref<16x256xf32, #tpu.memory_space<vmem>>, vector<8x256xf32>,
    %c0_230 = arith.constant 0 : index
    %c256_231 = arith.constant 256 : index
    %264 = vector.load %arg10[%c0_230, %c256_231] : memref<16x512xf32, #tpu.memory_space<vmem>>, vector<16x256xf32>
    %265 = vector.extract_strided_slice %264 {offsets = [0, 0], sizes = [8, 256], strides = [1, 1]} : vector<16x256xf32> to vector<8x256xf32>
    %266 = vector.extract_strided_slice %251 {offsets = [0, 1], sizes = [8, 1], strides = [1, 1]} : vector<8x8xf32> to vector<8x1xf32>
    %267 = vector.broadcast %266 : vector<8x1xf32> to vector<8x256xf32>
    %268 = arith.mulf %265, %267 : vector<8x256xf32>
    %269 = vector.extract_strided_slice %264 {offsets = [8, 0], sizes = [8, 256], strides = [1, 1]} : vector<16x256xf32> to vector<8x256xf32>
    %270 = vector.extract_strided_slice %252 {offsets = [0, 1], sizes = [8, 1], strides = [1, 1]} : vector<8x8xf32> to vector<8x1xf32>
    %271 = vector.broadcast %270 : vector<8x1xf32> to vector<8x256xf32>
    %272 = arith.mulf %269, %271 : vector<8x256xf32>
    %273 = arith.addf %268, %272 : vector<8x256xf32>
    %c8_232 = arith.constant 8 : index
    %c0_233 = arith.constant 0 : index
    %274 = vector.load %arg7[%c8_232, %c0_233] : memref<16x256xf32, #tpu.memory_space<vmem>>, vector<8x256xf32>
    tpu.vector_store %arg7[%c8_232, %c0_233], %273 {strides = array<i32>} : memref<16x256xf32, #tpu.memory_space<vmem>>, vector<8x256xf32>,
    return
  }
  func.func @transform_0(%arg0: i32) -> (i32, i32) {
    %c0_i32 = arith.constant 0 : i32
    %c0_i32_0 = arith.constant 0 : i32
    return %arg0, %c0_i32 : i32, i32
  }
  func.func @transform_1(%arg0: i32) -> (i32, i32) {
    %c0_i32 = arith.constant 0 : i32
    %c0_i32_0 = arith.constant 0 : i32
    %c0_i32_1 = arith.constant 0 : i32
    return %c0_i32, %c0_i32_0 : i32, i32
  }
  func.func @transform_2(%arg0: i32) -> (i32, i32) {
    %c0_i32 = arith.constant 0 : i32
    %c0_i32_0 = arith.constant 0 : i32
    %c0_i32_1 = arith.constant 0 : i32
    return %c0_i32, %c0_i32_0 : i32, i32
  }
  func.func @transform_3(%arg0: i32) -> (i32, i32) {
    %c0_i32 = arith.constant 0 : i32
    %c0_i32_0 = arith.constant 0 : i32
    %c0_i32_1 = arith.constant 0 : i32
    return %c0_i32, %c0_i32_0 : i32, i32
  }
  func.func @transform_4(%arg0: i32) -> (i32, i32) {
    %c0_i32 = arith.constant 0 : i32
    %c0_i32_0 = arith.constant 0 : i32
    %c0_i32_1 = arith.constant 0 : i32
    return %c0_i32, %c0_i32_0 : i32, i32
  }
  func.func @transform_5(%arg0: i32) -> (i32, i32) {
    %c0_i32 = arith.constant 0 : i32
    %c0_i32_0 = arith.constant 0 : i32
    %c0_i32_1 = arith.constant 0 : i32
    return %c0_i32, %c0_i32_0 : i32, i32
  }
  func.func @transform_6(%arg0: i32) -> (i32, i32) {
    %c0_i32 = arith.constant 0 : i32
    %c0_i32_0 = arith.constant 0 : i32
    return %arg0, %c0_i32 : i32, i32
  }
}

</mosaic_0001>

<llo_original>
// kernel: tpu_custom_call.1
$region0: #{tpu_custom_call.1}
  #allocation0 [shape = 'u32[]', space=smem, size = 0x4, offset = 0x4, fixed_abs, tag = 'smem constant byte address 0x4 - core index']
  #allocation1 [shape = 'u32[144,128]{1,0:T(1,128)}', space=vmem, size = 0x12000, scoped, tag = 'internal scratch']
  #allocation2 [shape = 'f32[4,324]{1,0:T(4,128)}', space=vmem, size = 0x1800, scoped, tag = 'scratch operand']
  #allocation3 [shape = 'f32[104,512]{1,0:T(8,128)}', space=vmem, size = 0x34000, scoped, tag = 'scratch operand']
  #allocation4 [shape = 'f32[16,512]{1,0:T(8,128)}', space=vmem, size = 0x8000, scoped, tag = 'scratch operand']
  %s0 = inlined_call_operand.vmem [shape: f32[8,256], index: 0, kind: input, shape index: {}]
  %s1 = inlined_call_operand.vmem [shape: f32[16,104], index: 1, kind: input, shape index: {}]
  %s2 = inlined_call_operand.vmem [shape: f32[16,1], index: 2, kind: input, shape index: {}]
  %s3 = inlined_call_operand.hbm [shape: f32[104,256], index: 3, kind: input, shape index: {}]
  %s4 = inlined_call_operand.vmem [shape: f32[32,8], index: 4, kind: input, shape index: {}]
  %s5 = inlined_call_operand.vmem [shape: f32[16,32], index: 5, kind: input, shape index: {}]
  %s6 = inlined_call_operand.hbm [shape: f32[16,256], index: 6, kind: output, shape index: {}]
  %s7 = sld [smem:[#allocation0]]
  $region38: #{tpu_custom_call.1} parent=0
    _
  %s9 = ssub.s32 1, %s7
  %s10 = scalar_select 0, %s9, %s7
  $region1: #{tpu_custom_call.1} parent=0
    #allocation5 [shape = 'u8[106496]{0}', space=vmem, size = 0x1a000, scoped, tag = 'input window, operand 3, single buffered']
    #allocation6 [shape = 's32[1]{0}', space=sflag, size = 0x4, scoped, tag = 'scoped memory for tpu_custom_call.1']
    #allocation7 [shape = 's32[1]{0}', space=sflag, size = 0x4, scoped, tag = 'scoped memory for tpu_custom_call.1']
    #allocation8 [shape = 'u8[16384]{0}', space=vmem, size = 0x4000, scoped, tag = 'output window, operand 0, single buffered']
    %11 = vsyncpa [#allocation6], 0
    %12 = vsyncpa [#allocation7], 0
    // Predicated region
    $region2: #{tpu_custom_call.1} parent=1 // pred_check
      _
    $region3: #{tpu_custom_call.1} parent=1 // pred_check_branch
      %14 = sbr.rel (0) target = $region5
    $region4: #{tpu_custom_call.1} parent=1 // pred_region
      _
    $region5: #{tpu_custom_call.1} parent=1 // pred_fallthru
      _
    // Predicated region
    $region6: #{tpu_custom_call.1} parent=1 // pred_check
      _
    $region7: #{tpu_custom_call.1} parent=1 // pred_check_branch
      %16 = sbr.rel (0) target = $region9
    $region8: #{tpu_custom_call.1} parent=1 // pred_region
      _
    $region9: #{tpu_custom_call.1} parent=1 // pred_fallthru
      _
    // Predicated region
    $region10: #{tpu_custom_call.1} parent=1 // pred_check
      _
    $region11: #{tpu_custom_call.1} parent=1 // pred_check_branch
      %18 = sbr.rel (0) target = $region13
    $region12: #{tpu_custom_call.1} parent=1 // pred_region
      _
    $region13: #{tpu_custom_call.1} parent=1 // pred_fallthru
      _
    // Predicated region
    $region14: #{tpu_custom_call.1} parent=1 // pred_check
      _
    $region15: #{tpu_custom_call.1} parent=1 // pred_check_branch
      %20 = sbr.rel (0) target = $region17
    $region16: #{tpu_custom_call.1} parent=1 // pred_region
      %s22 = ssub.s32 3328, 3328
      %23 = vsyncadd [#allocation6], %s22
      %s24 = sshll.u32 [#allocation5], 4
      %s25 = int_to_ptr.vmem [resolvable:$true] %s24
      %30 = dma.hbm_to_vmem [thread:$0]  %s3, 3328, %s25, [#allocation6], 256, 256, 16
    $region17: #{tpu_custom_call.1} parent=1 // pred_fallthru
      _
    // Predicated region
    $region18: #{tpu_custom_call.1} parent=1 // pred_check
      _
    $region19: #{tpu_custom_call.1} parent=1 // pred_check_branch
      %32 = sbr.rel (0) target = $region21
    $region20: #{tpu_custom_call.1} parent=1 // pred_region
      _
    $region21: #{tpu_custom_call.1} parent=1 // pred_fallthru
      _
    // Predicated region
    $region22: #{tpu_custom_call.1} parent=1 // pred_check
      _
    $region23: #{tpu_custom_call.1} parent=1 // pred_check_branch
      %34 = sbr.rel (0) target = $region25
    $region24: #{tpu_custom_call.1} parent=1 // pred_region
      _
    $region25: #{tpu_custom_call.1} parent=1 // pred_fallthru
      _
    // Predicated region
    $region26: #{tpu_custom_call.1} parent=1 // pred_check
      _
    $region27: #{tpu_custom_call.1} parent=1 // pred_check_branch
      %36 = sbr.rel (0) target = $region29
    $region28: #{tpu_custom_call.1} parent=1 // pred_region
      %37 = dma.done [#allocation6], 3328
    $region29: #{tpu_custom_call.1} parent=1 // pred_fallthru
      _
    %38 = vst [vmem:[#allocation2] sm:$0xff] 0.0
    %vm39 = vcmask 551936
    %40 = vst.msk [vmem:[#allocation2 + $0x8] sm:$0xf] %vm39, 0.0
    %v41 = vld [vmem:[%s0] sm:$0xf]
    %v42 = vld [vmem:[%s0 + $0x8] sm:$0xf]
    %v45 = vcombine.low %v41, %v42
    %46 = vrot.lane.b32.xlu0 %v45, 34
    %v47 = vpop.permute.xlu0 %46
    %v48 = vrot.slane %v47, 4
    %vm49 = vcmask 277504
    %v50 = vsel %vm49, %v48, %v47
    %vm53 = vcmask 1043728
    %vm54 = vcmask 1047556
    %vm55 = vmor %vm54, %vm53
    %56 = vst.msk [vmem:[#allocation2] sm:$0xff] %vm55, %v50
    %vm57 = vcmask 273408
    %58 = vst.msk [vmem:[#allocation2 + $0x8] sm:$0xf] %vm57, %v48
    %v59 = vld [vmem:[#allocation2] sm:$0xff]
    %v60 = vld [vmem:[#allocation2 + $0x8] sm:$0xf]
    %v62 = vcombine.high %v59, %v59
    %v65 = vcombine.low %v59, %v59
    %v66 = vcombine.low %v60, %v60
    %67 = vrot.lane.b32.xlu0 %v65, 127
    %v68 = vpop.permute.xlu0 %67
    %69 = vrot.lane.b32.xlu0 %v59, 127
    %v70 = vpop.permute.xlu0 %69
    %71 = vrot.lane.b32.xlu0 %v66, 127
    %v72 = vpop.permute.xlu0 %71
    %vm73 = vcmask 1039360
    %v74 = vsel %vm73, %v68, %v70
    %v75 = vsel %vm73, %v70, %v72
    %vm78 = vcmask 1043456
    %v79 = vsel %vm78, %v59, %v74
    %v80 = vsel %vm78, %v62, %v75
    %v81 = vld [vmem:[#allocation5] sm:$0xff]
    %v82 = vld [vmem:[#allocation5 + $0x8] sm:$0xff]
    %v83 = vmul.f32 %v79, %v81
    %v84 = vmul.f32 %v80, %v82
    %85 = vst [vmem:[#allocation3] sm:$0xff] %v83
    %86 = vst [vmem:[#allocation3 + $0x8] sm:$0xff] %v84
    %v87 = vld [vmem:[#allocation2] sm:$0xff]
    %v88 = vld [vmem:[#allocation2 + $0x8] sm:$0xf]
    %v91 = vcombine.high %v87, %v87
    %v93 = vcombine.low %v87, %v87
    %v94 = vcombine.low %v88, %v88
    %95 = vrot.lane.b32.xlu0 %v93, 127
    %v96 = vpop.permute.xlu0 %95
    %97 = vrot.lane.b32.xlu0 %v87, 127
    %v98 = vpop.permute.xlu0 %97
    %99 = vrot.lane.b32.xlu0 %v94, 127
    %v100 = vpop.permute.xlu0 %99
    %v101 = vsel %vm73, %v96, %v98
    %v102 = vsel %vm73, %v98, %v100
    %v106 = vsel %vm78, %v87, %v101
    %v107 = vsel %vm78, %v91, %v102
    %v108 = vsel %vm78, %v88, %v100
    %v109 = vld [vmem:[#allocation5 + $0x10] sm:$0xff]
    %v110 = vld [vmem:[#allocation5 + $0x18] sm:$0xff]
    %113 = vrot.lane.b32.xlu0 %v109, 2
    %v114 = vpop.permute.xlu0 %113
    %115 = vrot.lane.b32.xlu0 %v110, 2
    %v116 = vpop.permute.xlu0 %115
    %vm117 = vcmask 15360
    %v118 = vsel %vm117, %v114, %v116
    %v122 = vmul.f32 %v106, %v114
    %v123 = vmul.f32 %v107, %v118
    %v124 = vmul.f32 %v108, %v116
    %128 = vrot.lane.b32.xlu0 %v122, 126
    %v129 = vpop.permute.xlu0 %128
    %130 = vrot.lane.b32.xlu0 %v123, 126
    %v131 = vpop.permute.xlu0 %130
    %132 = vrot.lane.b32.xlu0 %v124, 126
    %v133 = vpop.permute.xlu0 %132
    %vm134 = vcmask 1031168
    %v135 = vsel %vm134, %v129, %v131
    %v136 = vsel %vm134, %v131, %v133
    %139 = vst [vmem:[#allocation3 + $0x20] sm:$0xff] %v135
    %140 = vst [vmem:[#allocation3 + $0x28] sm:$0xff] %v136
    %v141 = vld [vmem:[#allocation2] sm:$0xff]
    %v142 = vld [vmem:[#allocation2 + $0x8] sm:$0xf]
    %v145 = vcombine.high %v141, %v141
    %v147 = vcombine.low %v141, %v141
    %v148 = vcombine.low %v142, %v142
    %149 = vrot.lane.b32.xlu0 %v147, 116
    %v150 = vpop.permute.xlu0 %149
    %151 = vrot.lane.b32.xlu0 %v141, 116
    %v152 = vpop.permute.xlu0 %151
    %153 = vrot.lane.b32.xlu0 %v148, 116
    %v154 = vpop.permute.xlu0 %153
    %vm155 = vcmask 949248
    %v156 = vsel %vm155, %v150, %v152
    %v157 = vsel %vm155, %v152, %v154
    %v161 = vsel %vm78, %v141, %v156
    %v162 = vsel %vm78, %v145, %v157
    %v163 = vsel %vm78, %v142, %v154
    %v164 = vld [vmem:[#allocation5 + $0x20] sm:$0xff]
    %v165 = vld [vmem:[#allocation5 + $0x28] sm:$0xff]
    %168 = vrot.lane.b32.xlu0 %v164, 4
    %v169 = vpop.permute.xlu0 %168
    %170 = vrot.lane.b32.xlu0 %v165, 4
    %v171 = vpop.permute.xlu0 %170
    %vm172 = vcmask 31744
    %v173 = vsel %vm172, %v169, %v171
    %v177 = vmul.f32 %v161, %v169
    %v178 = vmul.f32 %v162, %v173
    %v179 = vmul.f32 %v163, %v171
    %183 = vrot.lane.b32.xlu0 %v177, 124
    %v184 = vpop.permute.xlu0 %183
    %185 = vrot.lane.b32.xlu0 %v178, 124
    %v186 = vpop.permute.xlu0 %185
    %187 = vrot.lane.b32.xlu0 %v179, 124
    %v188 = vpop.permute.xlu0 %187
    %vm189 = vcmask 1014784
    %v190 = vsel %vm189, %v184, %v186
    %v191 = vsel %vm189, %v186, %v188
    %194 = vst [vmem:[#allocation3 + $0x40] sm:$0xff] %v190
    %195 = vst [vmem:[#allocation3 + $0x48] sm:$0xff] %v191
    %v196 = vld [vmem:[#allocation2] sm:$0xff]
    %v197 = vld [vmem:[#allocation2 + $0x8] sm:$0xf]
    %v200 = vcombine.high %v196, %v196
    %v202 = vcombine.low %v196, %v196
    %v203 = vcombine.low %v197, %v197
    %204 = vrot.lane.b32.xlu0 %v202, 127
    %v205 = vpop.permute.xlu0 %204
    %206 = vrot.lane.b32.xlu0 %v196, 127
    %v207 = vpop.permute.xlu0 %206
    %208 = vrot.lane.b32.xlu0 %v203, 127
    %v209 = vpop.permute.xlu0 %208
    %v210 = vsel %vm73, %v205, %v207
    %v211 = vsel %vm73, %v207, %v209
    %v215 = vsel %vm78, %v196, %v210
    %v216 = vsel %vm78, %v200, %v211
    %v217 = vsel %vm78, %v197, %v209
    %v218 = vld [vmem:[#allocation5 + $0x30] sm:$0xff]
    %v219 = vld [vmem:[#allocation5 + $0x38] sm:$0xff]
    %222 = vrot.lane.b32.xlu0 %v218, 17
    %v223 = vpop.permute.xlu0 %222
    %224 = vrot.lane.b32.xlu0 %v219, 17
    %v225 = vpop.permute.xlu0 %224
    %vm226 = vcmask 138240
    %v227 = vsel %vm226, %v223, %v225
    %v231 = vmul.f32 %v215, %v223
    %v232 = vmul.f32 %v216, %v227
    %v233 = vmul.f32 %v217, %v225
    %237 = vrot.lane.b32.xlu0 %v231, 111
    %v238 = vpop.permute.xlu0 %237
    %239 = vrot.lane.b32.xlu0 %v232, 111
    %v240 = vpop.permute.xlu0 %239
    %241 = vrot.lane.b32.xlu0 %v233, 111
    %v242 = vpop.permute.xlu0 %241
    %vm243 = vcmask 908288
    %v244 = vsel %vm243, %v238, %v240
    %v245 = vsel %vm243, %v240, %v242
    %248 = vst [vmem:[#allocation3 + $0x60] sm:$0xff] %v244
    %249 = vst [vmem:[#allocation3 + $0x68] sm:$0xff] %v245
    %v250 = vld [vmem:[#allocation2] sm:$0xff]
    %v251 = vld [vmem:[#allocation2 + $0x8] sm:$0xf]
    %v254 = vcombine.high %v250, %v250
    %v256 = vcombine.low %v250, %v250
    %v257 = vcombine.low %v251, %v251
    %258 = vrot.lane.b32.xlu0 %v256, 127
    %v259 = vpop.permute.xlu0 %258
    %260 = vrot.lane.b32.xlu0 %v250, 127
    %v261 = vpop.permute.xlu0 %260
    %262 = vrot.lane.b32.xlu0 %v257, 127
    %v263 = vpop.permute.xlu0 %262
    %v264 = vsel %vm73, %v259, %v261
    %v265 = vsel %vm73, %v261, %v263
    %v269 = vsel %vm78, %v250, %v264
    %v270 = vsel %vm78, %v254, %v265
    %v271 = vsel %vm78, %v251, %v263
    %v272 = vld [vmem:[#allocation5 + $0x40] sm:$0xff]
    %v273 = vld [vmem:[#allocation5 + $0x48] sm:$0xff]
    %276 = vrot.lane.b32.xlu0 %v272, 19
    %v277 = vpop.permute.xlu0 %276
    %278 = vrot.lane.b32.xlu0 %v273, 19
    %v279 = vpop.permute.xlu0 %278
    %vm280 = vcmask 154624
    %v281 = vsel %vm280, %v277, %v279
    %v285 = vmul.f32 %v269, %v277
    %v286 = vmul.f32 %v270, %v281
    %v287 = vmul.f32 %v271, %v279
    %291 = vrot.lane.b32.xlu0 %v285, 109
    %v292 = vpop.permute.xlu0 %291
    %293 = vrot.lane.b32.xlu0 %v286, 109
    %v294 = vpop.permute.xlu0 %293
    %295 = vrot.lane.b32.xlu0 %v287, 109
    %v296 = vpop.permute.xlu0 %295
    %vm297 = vcmask 891904
    %v298 = vsel %vm297, %v292, %v294
    %v299 = vsel %vm297, %v294, %v296
    %302 = vst [vmem:[#allocation3 + $0x80] sm:$0xff] %v298
    %303 = vst [vmem:[#allocation3 + $0x88] sm:$0xff] %v299
    %v304 = vld [vmem:[#allocation2] sm:$0xff]
    %v305 = vld [vmem:[#allocation2 + $0x8] sm:$0xf]
    %v308 = vcombine.high %v304, %v304
    %v310 = vcombine.low %v304, %v304
    %v311 = vcombine.low %v305, %v305
    %312 = vrot.lane.b32.xlu0 %v310, 127
    %v313 = vpop.permute.xlu0 %312
    %314 = vrot.lane.b32.xlu0 %v304, 127
    %v315 = vpop.permute.xlu0 %314
    %316 = vrot.lane.b32.xlu0 %v311, 127
    %v317 = vpop.permute.xlu0 %316
    %v318 = vsel %vm73, %v313, %v315
    %v319 = vsel %vm73, %v315, %v317
    %v323 = vsel %vm78, %v304, %v318
    %v324 = vsel %vm78, %v308, %v319
    %v325 = vsel %vm78, %v305, %v317
    %v326 = vld [vmem:[#allocation5 + $0x50] sm:$0xff]
    %v327 = vld [vmem:[#allocation5 + $0x58] sm:$0xff]
    %330 = vrot.lane.b32.xlu0 %v326, 32
    %v331 = vpop.permute.xlu0 %330
    %332 = vrot.lane.b32.xlu0 %v327, 32
    %v333 = vpop.permute.xlu0 %332
    %vm334 = vcmask 261120
    %v335 = vsel %vm334, %v331, %v333
    %v339 = vmul.f32 %v323, %v331
    %v340 = vmul.f32 %v324, %v335
    %v341 = vmul.f32 %v325, %v333
    %345 = vrot.lane.b32.xlu0 %v339, 96
    %v346 = vpop.permute.xlu0 %345
    %347 = vrot.lane.b32.xlu0 %v340, 96
    %v348 = vpop.permute.xlu0 %347
    %349 = vrot.lane.b32.xlu0 %v341, 96
    %v350 = vpop.permute.xlu0 %349
    %vm351 = vcmask 785408
    %v352 = vsel %vm351, %v346, %v348
    %v353 = vsel %vm351, %v348, %v350
    %356 = vst [vmem:[#allocation3 + $0xa0] sm:$0xff] %v352
    %357 = vst [vmem:[#allocation3 + $0xa8] sm:$0xff] %v353
    %v358 = vld [vmem:[#allocation2] sm:$0xff]
    %v359 = vld [vmem:[#allocation2 + $0x8] sm:$0xf]
    %v362 = vcombine.high %v358, %v358
    %v364 = vcombine.low %v358, %v358
    %v365 = vcombine.low %v359, %v359
    %366 = vrot.lane.b32.xlu0 %v364, 127
    %v367 = vpop.permute.xlu0 %366
    %368 = vrot.lane.b32.xlu0 %v358, 127
    %v369 = vpop.permute.xlu0 %368
    %370 = vrot.lane.b32.xlu0 %v365, 127
    %v371 = vpop.permute.xlu0 %370
    %v372 = vsel %vm73, %v367, %v369
    %v373 = vsel %vm73, %v369, %v371
    %v377 = vsel %vm78, %v358, %v372
    %v378 = vsel %vm78, %v362, %v373
    %v379 = vsel %vm78, %v359, %v371
    %v380 = vld [vmem:[#allocation5 + $0x60] sm:$0xff]
    %v381 = vld [vmem:[#allocation5 + $0x68] sm:$0xff]
    %384 = vrot.lane.b32.xlu0 %v380, 34
    %v385 = vpop.permute.xlu0 %384
    %386 = vrot.lane.b32.xlu0 %v381, 34
    %v387 = vpop.permute.xlu0 %386
    %v388 = vsel %vm49, %v385, %v387
    %v392 = vmul.f32 %v377, %v385
    %v393 = vmul.f32 %v378, %v388
    %v394 = vmul.f32 %v379, %v387
    %398 = vrot.lane.b32.xlu0 %v392, 94
    %v399 = vpop.permute.xlu0 %398
    %400 = vrot.lane.b32.xlu0 %v393, 94
    %v401 = vpop.permute.xlu0 %400
    %402 = vrot.lane.b32.xlu0 %v394, 94
    %v403 = vpop.permute.xlu0 %402
    %vm404 = vcmask 769024
    %v405 = vsel %vm404, %v399, %v401
    %v406 = vsel %vm404, %v401, %v403
    %409 = vst [vmem:[#allocation3 + $0xc0] sm:$0xff] %v405
    %410 = vst [vmem:[#allocation3 + $0xc8] sm:$0xff] %v406
    %v411 = vld [vmem:[#allocation2] sm:$0xff]
    %v412 = vld [vmem:[#allocation2 + $0x8] sm:$0xf]
    %v415 = vcombine.high %v411, %v411
    %v417 = vcombine.low %v411, %v411
    %v418 = vcombine.low %v412, %v412
    %419 = vrot.lane.b32.xlu0 %v417, 116
    %v420 = vpop.permute.xlu0 %419
    %421 = vrot.lane.b32.xlu0 %v411, 116
    %v422 = vpop.permute.xlu0 %421
    %423 = vrot.lane.b32.xlu0 %v418, 116
    %v424 = vpop.permute.xlu0 %423
    %v425 = vsel %vm155, %v420, %v422
    %v426 = vsel %vm155, %v422, %v424
    %v430 = vsel %vm78, %v411, %v425
    %v431 = vsel %vm78, %v415, %v426
    %v432 = vsel %vm78, %v412, %v424
    %v433 = vld [vmem:[#allocation5 + $0x70] sm:$0xff]
    %v434 = vld [vmem:[#allocation5 + $0x78] sm:$0xff]
    %437 = vrot.lane.b32.xlu0 %v433, 36
    %v438 = vpop.permute.xlu0 %437
    %439 = vrot.lane.b32.xlu0 %v434, 36
    %v440 = vpop.permute.xlu0 %439
    %vm441 = vcmask 293888
    %v442 = vsel %vm441, %v438, %v440
    %v446 = vmul.f32 %v430, %v438
    %v447 = vmul.f32 %v431, %v442
    %v448 = vmul.f32 %v432, %v440
    %452 = vrot.lane.b32.xlu0 %v446, 92
    %v453 = vpop.permute.xlu0 %452
    %454 = vrot.lane.b32.xlu0 %v447, 92
    %v455 = vpop.permute.xlu0 %454
    %456 = vrot.lane.b32.xlu0 %v448, 92
    %v457 = vpop.permute.xlu0 %456
    %vm458 = vcmask 752640
    %v459 = vsel %vm458, %v453, %v455
    %v460 = vsel %vm458, %v455, %v457
    %463 = vst [vmem:[#allocation3 + $0xe0] sm:$0xff] %v459
    %464 = vst [vmem:[#allocation3 + $0xe8] sm:$0xff] %v460
    %v465 = vld [vmem:[#allocation2] sm:$0xff]
    %v466 = vld [vmem:[#allocation2 + $0x8] sm:$0xf]
    %v469 = vcombine.high %v465, %v465
    %v471 = vcombine.low %v465, %v465
    %v472 = vcombine.low %v466, %v466
    %473 = vrot.lane.b32.xlu0 %v471, 127
    %v474 = vpop.permute.xlu0 %473
    %475 = vrot.lane.b32.xlu0 %v465, 127
    %v476 = vpop.permute.xlu0 %475
    %477 = vrot.lane.b32.xlu0 %v472, 127
    %v478 = vpop.permute.xlu0 %477
    %v479 = vsel %vm73, %v474, %v476
    %v480 = vsel %vm73, %v476, %v478
    %v484 = vsel %vm78, %v465, %v479
    %v485 = vsel %vm78, %v469, %v480
    %v486 = vsel %vm78, %v466, %v478
    %v487 = vld [vmem:[#allocation5 + $0x80] sm:$0xff]
    %v488 = vld [vmem:[#allocation5 + $0x88] sm:$0xff]
    %491 = vrot.lane.b32.xlu0 %v487, 49
    %v492 = vpop.permute.xlu0 %491
    %493 = vrot.lane.b32.xlu0 %v488, 49
    %v494 = vpop.permute.xlu0 %493
    %vm495 = vcmask 400384
    %v496 = vsel %vm495, %v492, %v494
    %v500 = vmul.f32 %v484, %v492
    %v501 = vmul.f32 %v485, %v496
    %v502 = vmul.f32 %v486, %v494
    %506 = vrot.lane.b32.xlu0 %v500, 79
    %v507 = vpop.permute.xlu0 %506
    %508 = vrot.lane.b32.xlu0 %v501, 79
    %v509 = vpop.permute.xlu0 %508
    %510 = vrot.lane.b32.xlu0 %v502, 79
    %v511 = vpop.permute.xlu0 %510
    %vm512 = vcmask 646144
    %v513 = vsel %vm512, %v507, %v509
    %v514 = vsel %vm512, %v509, %v511
    %517 = vst [vmem:[#allocation3 + $0x100] sm:$0xff] %v513
    %518 = vst [vmem:[#allocation3 + $0x108] sm:$0xff] %v514
    %v519 = vld [vmem:[#allocation2] sm:$0xff]
    %v520 = vld [vmem:[#allocation2 + $0x8] sm:$0xf]
    %v523 = vcombine.high %v519, %v519
    %v525 = vcombine.low %v519, %v519
    %v526 = vcombine.low %v520, %v520
    %527 = vrot.lane.b32.xlu0 %v525, 127
    %v528 = vpop.permute.xlu0 %527
    %529 = vrot.lane.b32.xlu0 %v519, 127
    %v530 = vpop.permute.xlu0 %529
    %531 = vrot.lane.b32.xlu0 %v526, 127
    %v532 = vpop.permute.xlu0 %531
    %v533 = vsel %vm73, %v528, %v530
    %v534 = vsel %vm73, %v530, %v532
    %v538 = vsel %vm78, %v519, %v533
    %v539 = vsel %vm78, %v523, %v534
    %v540 = vsel %vm78, %v520, %v532
    %v541 = vld [vmem:[#allocation5 + $0x90] sm:$0xff]
    %v542 = vld [vmem:[#allocation5 + $0x98] sm:$0xff]
    %545 = vrot.lane.b32.xlu0 %v541, 51
    %v546 = vpop.permute.xlu0 %545
    %547 = vrot.lane.b32.xlu0 %v542, 51
    %v548 = vpop.permute.xlu0 %547
    %vm549 = vcmask 416768
    %v550 = vsel %vm549, %v546, %v548
    %v554 = vmul.f32 %v538, %v546
    %v555 = vmul.f32 %v539, %v550
    %v556 = vmul.f32 %v540, %v548
    %560 = vrot.lane.b32.xlu0 %v554, 77
    %v561 = vpop.permute.xlu0 %560
    %562 = vrot.lane.b32.xlu0 %v555, 77
    %v563 = vpop.permute.xlu0 %562
    %564 = vrot.lane.b32.xlu0 %v556, 77
    %v565 = vpop.permute.xlu0 %564
    %vm566 = vcmask 629760
    %v567 = vsel %vm566, %v561, %v563
    %v568 = vsel %vm566, %v563, %v565
    %571 = vst [vmem:[#allocation3 + $0x120] sm:$0xff] %v567
    %572 = vst [vmem:[#allocation3 + $0x128] sm:$0xff] %v568
    %v573 = vld [vmem:[#allocation2] sm:$0xff]
    %v574 = vld [vmem:[#allocation2 + $0x8] sm:$0xf]
    %v577 = vcombine.high %v573, %v573
    %v579 = vcombine.low %v573, %v573
    %v580 = vcombine.low %v574, %v574
    %581 = vrot.lane.b32.xlu0 %v579, 127
    %v582 = vpop.permute.xlu0 %581
    %583 = vrot.lane.b32.xlu0 %v573, 127
    %v584 = vpop.permute.xlu0 %583
    %585 = vrot.lane.b32.xlu0 %v580, 127
    %v586 = vpop.permute.xlu0 %585
    %v587 = vsel %vm73, %v582, %v584
    %v588 = vsel %vm73, %v584, %v586
    %v592 = vsel %vm78, %v573, %v587
    %v593 = vsel %vm78, %v577, %v588
    %v594 = vsel %vm78, %v574, %v586
    %v595 = vld [vmem:[#allocation5 + $0xa0] sm:$0xff]
    %v596 = vld [vmem:[#allocation5 + $0xa8] sm:$0xff]
    %599 = vrot.lane.b32.xlu0 %v595, 64
    %v600 = vpop.permute.xlu0 %599
    %601 = vrot.lane.b32.xlu0 %v596, 64
    %v602 = vpop.permute.xlu0 %601
    %vm603 = vcmask 523264
    %v604 = vsel %vm603, %v600, %v602
    %v608 = vmul.f32 %v592, %v600
    %v609 = vmul.f32 %v593, %v604
    %v610 = vmul.f32 %v594, %v602
    %614 = vrot.lane.b32.xlu0 %v608, 64
    %v615 = vpop.permute.xlu0 %614
    %616 = vrot.lane.b32.xlu0 %v609, 64
    %v617 = vpop.permute.xlu0 %616
    %618 = vrot.lane.b32.xlu0 %v610, 64
    %v619 = vpop.permute.xlu0 %618
    %v620 = vsel %vm603, %v615, %v617
    %v621 = vsel %vm603, %v617, %v619
    %624 = vst [vmem:[#allocation3 + $0x140] sm:$0xff] %v620
    %625 = vst [vmem:[#allocation3 + $0x148] sm:$0xff] %v621
    %v626 = vld [vmem:[#allocation2] sm:$0xff]
    %v627 = vld [vmem:[#allocation2 + $0x8] sm:$0xf]
    %v630 = vcombine.high %v626, %v626
    %v632 = vcombine.low %v626, %v626
    %v633 = vcombine.low %v627, %v627
    %634 = vrot.lane.b32.xlu0 %v632, 127
    %v635 = vpop.permute.xlu0 %634
    %636 = vrot.lane.b32.xlu0 %v626, 127
    %v637 = vpop.permute.xlu0 %636
    %638 = vrot.lane.b32.xlu0 %v633, 127
    %v639 = vpop.permute.xlu0 %638
    %v640 = vsel %vm73, %v635, %v637
    %v641 = vsel %vm73, %v637, %v639
    %v645 = vsel %vm78, %v626, %v640
    %v646 = vsel %vm78, %v630, %v641
    %v647 = vsel %vm78, %v627, %v639
    %v648 = vld [vmem:[#allocation5 + $0xb0] sm:$0xff]
    %v649 = vld [vmem:[#allocation5 + $0xb8] sm:$0xff]
    %652 = vrot.lane.b32.xlu0 %v648, 66
    %v653 = vpop.permute.xlu0 %652
    %654 = vrot.lane.b32.xlu0 %v649, 66
    %v655 = vpop.permute.xlu0 %654
    %vm656 = vcmask 539648
    %v657 = vsel %vm656, %v653, %v655
    %v661 = vmul.f32 %v645, %v653
    %v662 = vmul.f32 %v646, %v657
    %v663 = vmul.f32 %v647, %v655
    %667 = vrot.lane.b32.xlu0 %v661, 62
    %v668 = vpop.permute.xlu0 %667
    %669 = vrot.lane.b32.xlu0 %v662, 62
    %v670 = vpop.permute.xlu0 %669
    %671 = vrot.lane.b32.xlu0 %v663, 62
    %v672 = vpop.permute.xlu0 %671
    %vm673 = vcmask 506880
    %v674 = vsel %vm673, %v668, %v670
    %v675 = vsel %vm673, %v670, %v672
    %678 = vst [vmem:[#allocation3 + $0x160] sm:$0xff] %v674
    %679 = vst [vmem:[#allocation3 + $0x168] sm:$0xff] %v675
    %v680 = vld [vmem:[#allocation2] sm:$0xff]
    %v681 = vld [vmem:[#allocation2 + $0x8] sm:$0xf]
    %v683 = vcombine.high %v680, %v680
    %v685 = vsel %vm78, %v680, 0.0
    %v686 = vsel %vm78, %v683, 0.0
    %v687 = vsel %vm78, %v681, 0.0
    %v688 = vld [vmem:[#allocation5 + $0xc0] sm:$0xff]
    %v689 = vld [vmem:[#allocation5 + $0xc8] sm:$0xff]
    %692 = vrot.lane.b32.xlu0 %v688, 68
    %v693 = vpop.permute.xlu0 %692
    %694 = vrot.lane.b32.xlu0 %v689, 68
    %v695 = vpop.permute.xlu0 %694
    %vm696 = vcmask 556032
    %v697 = vsel %vm696, %v693, %v695
    %v701 = vmul.f32 %v685, %v693
    %v702 = vmul.f32 %v686, %v697
    %v703 = vmul.f32 %v687, %v695
    %707 = vrot.lane.b32.xlu0 %v701, 60
    %v708 = vpop.permute.xlu0 %707
    %709 = vrot.lane.b32.xlu0 %v702, 60
    %v710 = vpop.permute.xlu0 %709
    %711 = vrot.lane.b32.xlu0 %v703, 60
    %v712 = vpop.permute.xlu0 %711
    %vm713 = vcmask 490496
    %v714 = vsel %vm713, %v708, %v710
    %v715 = vsel %vm713, %v710, %v712
    %718 = vst [vmem:[#allocation3 + $0x180] sm:$0xff] %v714
    %719 = vst [vmem:[#allocation3 + $0x188] sm:$0xff] %v715
    %v720 = vld [vmem:[%s0] sm:$0xf0]
    %v721 = vld [vmem:[%s0 + $0x8] sm:$0xf0]
    %v724 = vcombine.high %v720, %v721
    %725 = vrot.lane.b32.xlu0 %v724, 34
    %v726 = vpop.permute.xlu0 %725
    %v727 = vrot.slane %v726, 4
    %v728 = vsel %vm49, %v727, %v726
    %731 = vst.msk [vmem:[#allocation2] sm:$0xff] %vm55, %v728
    %732 = vst.msk [vmem:[#allocation2 + $0x8] sm:$0xf] %vm57, %v727
    %v733 = vld [vmem:[#allocation2] sm:$0xff]
    %v734 = vld [vmem:[#allocation2 + $0x8] sm:$0xf]
    %v736 = vcombine.high %v733, %v733
    %v739 = vcombine.low %v733, %v733
    %v740 = vcombine.low %v734, %v734
    %741 = vrot.lane.b32.xlu0 %v739, 127
    %v742 = vpop.permute.xlu0 %741
    %743 = vrot.lane.b32.xlu0 %v733, 127
    %v744 = vpop.permute.xlu0 %743
    %745 = vrot.lane.b32.xlu0 %v740, 127
    %v746 = vpop.permute.xlu0 %745
    %v747 = vsel %vm73, %v742, %v744
    %v748 = vsel %vm73, %v744, %v746
    %v751 = vsel %vm78, %v733, %v747
    %v752 = vsel %vm78, %v736, %v748
    %v753 = vld [vmem:[#allocation5] sm:$0xff]
    %v754 = vld [vmem:[#allocation5 + $0x8] sm:$0xff]
    %v755 = vmul.f32 %v751, %v753
    %v756 = vmul.f32 %v752, %v754
    %757 = vst [vmem:[#allocation3 + $0x10] sm:$0xff] %v755
    %758 = vst [vmem:[#allocation3 + $0x18] sm:$0xff] %v756
    %v759 = vld [vmem:[#allocation2] sm:$0xff]
    %v760 = vld [vmem:[#allocation2 + $0x8] sm:$0xf]
    %v763 = vcombine.high %v759, %v759
    %v765 = vcombine.low %v759, %v759
    %v766 = vcombine.low %v760, %v760
    %767 = vrot.lane.b32.xlu0 %v765, 127
    %v768 = vpop.permute.xlu0 %767
    %769 = vrot.lane.b32.xlu0 %v759, 127
    %v770 = vpop.permute.xlu0 %769
    %771 = vrot.lane.b32.xlu0 %v766, 127
    %v772 = vpop.permute.xlu0 %771
    %v773 = vsel %vm73, %v768, %v770
    %v774 = vsel %vm73, %v770, %v772
    %v778 = vsel %vm78, %v759, %v773
    %v779 = vsel %vm78, %v763, %v774
    %v780 = vsel %vm78, %v760, %v772
    %v781 = vld [vmem:[#allocation5 + $0x10] sm:$0xff]
    %v782 = vld [vmem:[#allocation5 + $0x18] sm:$0xff]
    %785 = vrot.lane.b32.xlu0 %v781, 2
    %v786 = vpop.permute.xlu0 %785
    %787 = vrot.lane.b32.xlu0 %v782, 2
    %v788 = vpop.permute.xlu0 %787
    %v789 = vsel %vm117, %v786, %v788
    %v793 = vmul.f32 %v778, %v786
    %v794 = vmul.f32 %v779, %v789
    %v795 = vmul.f32 %v780, %v788
    %799 = vrot.lane.b32.xlu0 %v793, 126
    %v800 = vpop.permute.xlu0 %799
    %801 = vrot.lane.b32.xlu0 %v794, 126
    %v802 = vpop.permute.xlu0 %801
    %803 = vrot.lane.b32.xlu0 %v795, 126
    %v804 = vpop.permute.xlu0 %803
    %v805 = vsel %vm134, %v800, %v802
    %v806 = vsel %vm134, %v802, %v804
    %809 = vst [vmem:[#allocation3 + $0x30] sm:$0xff] %v805
    %810 = vst [vmem:[#allocation3 + $0x38] sm:$0xff] %v806
    %v811 = vld [vmem:[#allocation2] sm:$0xff]
    %v812 = vld [vmem:[#allocation2 + $0x8] sm:$0xf]
    %v815 = vcombine.high %v811, %v811
    %v817 = vcombine.low %v811, %v811
    %v818 = vcombine.low %v812, %v812
    %819 = vrot.lane.b32.xlu0 %v817, 116
    %v820 = vpop.permute.xlu0 %819
    %821 = vrot.lane.b32.xlu0 %v811, 116
    %v822 = vpop.permute.xlu0 %821
    %823 = vrot.lane.b32.xlu0 %v818, 116
    %v824 = vpop.permute.xlu0 %823
    %v825 = vsel %vm155, %v820, %v822
    %v826 = vsel %vm155, %v822, %v824
    %v830 = vsel %vm78, %v811, %v825
    %v831 = vsel %vm78, %v815, %v826
    %v832 = vsel %vm78, %v812, %v824
    %v833 = vld [vmem:[#allocation5 + $0x20] sm:$0xff]
    %v834 = vld [vmem:[#allocation5 + $0x28] sm:$0xff]
    %837 = vrot.lane.b32.xlu0 %v833, 4
    %v838 = vpop.permute.xlu0 %837
    %839 = vrot.lane.b32.xlu0 %v834, 4
    %v840 = vpop.permute.xlu0 %839
    %v841 = vsel %vm172, %v838, %v840
    %v845 = vmul.f32 %v830, %v838
    %v846 = vmul.f32 %v831, %v841
    %v847 = vmul.f32 %v832, %v840
    %851 = vrot.lane.b32.xlu0 %v845, 124
    %v852 = vpop.permute.xlu0 %851
    %853 = vrot.lane.b32.xlu0 %v846, 124
    %v854 = vpop.permute.xlu0 %853
    %855 = vrot.lane.b32.xlu0 %v847, 124
    %v856 = vpop.permute.xlu0 %855
    %v857 = vsel %vm189, %v852, %v854
    %v858 = vsel %vm189, %v854, %v856
    %861 = vst [vmem:[#allocation3 + $0x50] sm:$0xff] %v857
    %862 = vst [vmem:[#allocation3 + $0x58] sm:$0xff] %v858
    %v863 = vld [vmem:[#allocation2] sm:$0xff]
    %v864 = vld [vmem:[#allocation2 + $0x8] sm:$0xf]
    %v867 = vcombine.high %v863, %v863
    %v869 = vcombine.low %v863, %v863
    %v870 = vcombine.low %v864, %v864
    %871 = vrot.lane.b32.xlu0 %v869, 127
    %v872 = vpop.permute.xlu0 %871
    %873 = vrot.lane.b32.xlu0 %v863, 127
    %v874 = vpop.permute.xlu0 %873
    %875 = vrot.lane.b32.xlu0 %v870, 127
    %v876 = vpop.permute.xlu0 %875
    %v877 = vsel %vm73, %v872, %v874
    %v878 = vsel %vm73, %v874, %v876
    %v882 = vsel %vm78, %v863, %v877
    %v883 = vsel %vm78, %v867, %v878
    %v884 = vsel %vm78, %v864, %v876
    %v885 = vld [vmem:[#allocation5 + $0x30] sm:$0xff]
    %v886 = vld [vmem:[#allocation5 + $0x38] sm:$0xff]
    %889 = vrot.lane.b32.xlu0 %v885, 17
    %v890 = vpop.permute.xlu0 %889
    %891 = vrot.lane.b32.xlu0 %v886, 17
    %v892 = vpop.permute.xlu0 %891
    %v893 = vsel %vm226, %v890, %v892
    %v897 = vmul.f32 %v882, %v890
    %v898 = vmul.f32 %v883, %v893
    %v899 = vmul.f32 %v884, %v892
    %903 = vrot.lane.b32.xlu0 %v897, 111
    %v904 = vpop.permute.xlu0 %903
    %905 = vrot.lane.b32.xlu0 %v898, 111
    %v906 = vpop.permute.xlu0 %905
    %907 = vrot.lane.b32.xlu0 %v899, 111
    %v908 = vpop.permute.xlu0 %907
    %v909 = vsel %vm243, %v904, %v906
    %v910 = vsel %vm243, %v906, %v908
    %913 = vst [vmem:[#allocation3 + $0x70] sm:$0xff] %v909
    %914 = vst [vmem:[#allocation3 + $0x78] sm:$0xff] %v910
    %v915 = vld [vmem:[#allocation2] sm:$0xff]
    %v916 = vld [vmem:[#allocation2 + $0x8] sm:$0xf]
    %v919 = vcombine.high %v915, %v915
    %v921 = vcombine.low %v915, %v915
    %v922 = vcombine.low %v916, %v916
    %923 = vrot.lane.b32.xlu0 %v921, 127
    %v924 = vpop.permute.xlu0 %923
    %925 = vrot.lane.b32.xlu0 %v915, 127
    %v926 = vpop.permute.xlu0 %925
    %927 = vrot.lane.b32.xlu0 %v922, 127
    %v928 = vpop.permute.xlu0 %927
    %v929 = vsel %vm73, %v924, %v926
    %v930 = vsel %vm73, %v926, %v928
    %v934 = vsel %vm78, %v915, %v929
    %v935 = vsel %vm78, %v919, %v930
    %v936 = vsel %vm78, %v916, %v928
    %v937 = vld [vmem:[#allocation5 + $0x40] sm:$0xff]
    %v938 = vld [vmem:[#allocation5 + $0x48] sm:$0xff]
    %941 = vrot.lane.b32.xlu0 %v937, 19
    %v942 = vpop.permute.xlu0 %941
    %943 = vrot.lane.b32.xlu0 %v938, 19
    %v944 = vpop.permute.xlu0 %943
    %v945 = vsel %vm280, %v942, %v944
    %v949 = vmul.f32 %v934, %v942
    %v950 = vmul.f32 %v935, %v945
    %v951 = vmul.f32 %v936, %v944
    %955 = vrot.lane.b32.xlu0 %v949, 109
    %v956 = vpop.permute.xlu0 %955
    %957 = vrot.lane.b32.xlu0 %v950, 109
    %v958 = vpop.permute.xlu0 %957
    %959 = vrot.lane.b32.xlu0 %v951, 109
    %v960 = vpop.permute.xlu0 %959
    %v961 = vsel %vm297, %v956, %v958
    %v962 = vsel %vm297, %v958, %v960
    %965 = vst [vmem:[#allocation3 + $0x90] sm:$0xff] %v961
    %966 = vst [vmem:[#allocation3 + $0x98] sm:$0xff] %v962
    %v967 = vld [vmem:[#allocation2] sm:$0xff]
    %v968 = vld [vmem:[#allocation2 + $0x8] sm:$0xf]
    %v971 = vcombine.high %v967, %v967
    %v973 = vcombine.low %v967, %v967
    %v974 = vcombine.low %v968, %v968
    %975 = vrot.lane.b32.xlu0 %v973, 127
    %v976 = vpop.permute.xlu0 %975
    %977 = vrot.lane.b32.xlu0 %v967, 127
    %v978 = vpop.permute.xlu0 %977
    %979 = vrot.lane.b32.xlu0 %v974, 127
    %v980 = vpop.permute.xlu0 %979
    %v981 = vsel %vm73, %v976, %v978
    %v982 = vsel %vm73, %v978, %v980
    %v986 = vsel %vm78, %v967, %v981
    %v987 = vsel %vm78, %v971, %v982
    %v988 = vsel %vm78, %v968, %v980
    %v989 = vld [vmem:[#allocation5 + $0x50] sm:$0xff]
    %v990 = vld [vmem:[#allocation5 + $0x58] sm:$0xff]
    %993 = vrot.lane.b32.xlu0 %v989, 32
    %v994 = vpop.permute.xlu0 %993
    %995 = vrot.lane.b32.xlu0 %v990, 32
    %v996 = vpop.permute.xlu0 %995
    %v997 = vsel %vm334, %v994, %v996
    %v1001 = vmul.f32 %v986, %v994
    %v1002 = vmul.f32 %v987, %v997
    %v1003 = vmul.f32 %v988, %v996
    %1007 = vrot.lane.b32.xlu0 %v1001, 96
    %v1008 = vpop.permute.xlu0 %1007
    %1009 = vrot.lane.b32.xlu0 %v1002, 96
    %v1010 = vpop.permute.xlu0 %1009
    %1011 = vrot.lane.b32.xlu0 %v1003, 96
    %v1012 = vpop.permute.xlu0 %1011
    %v1013 = vsel %vm351, %v1008, %v1010
    %v1014 = vsel %vm351, %v1010, %v1012
    %1017 = vst [vmem:[#allocation3 + $0xb0] sm:$0xff] %v1013
    %1018 = vst [vmem:[#allocation3 + $0xb8] sm:$0xff] %v1014
    %v1019 = vld [vmem:[#allocation2] sm:$0xff]
    %v1020 = vld [vmem:[#allocation2 + $0x8] sm:$0xf]
    %v1023 = vcombine.high %v1019, %v1019
    %v1025 = vcombine.low %v1019, %v1019
    %v1026 = vcombine.low %v1020, %v1020
    %1027 = vrot.lane.b32.xlu0 %v1025, 127
    %v1028 = vpop.permute.xlu0 %1027
    %1029 = vrot.lane.b32.xlu0 %v1019, 127
    %v1030 = vpop.permute.xlu0 %1029
    %1031 = vrot.lane.b32.xlu0 %v1026, 127
    %v1032 = vpop.permute.xlu0 %1031
    %v1033 = vsel %vm73, %v1028, %v1030
    %v1034 = vsel %vm73, %v1030, %v1032
    %v1038 = vsel %vm78, %v1019, %v1033
    %v1039 = vsel %vm78, %v1023, %v1034
    %v1040 = vsel %vm78, %v1020, %v1032
    %v1041 = vld [vmem:[#allocation5 + $0x60] sm:$0xff]
    %v1042 = vld [vmem:[#allocation5 + $0x68] sm:$0xff]
    %1045 = vrot.lane.b32.xlu0 %v1041, 34
    %v1046 = vpop.permute.xlu0 %1045
    %1047 = vrot.lane.b32.xlu0 %v1042, 34
    %v1048 = vpop.permute.xlu0 %1047
    %v1049 = vsel %vm49, %v1046, %v1048
    %v1053 = vmul.f32 %v1038, %v1046
    %v1054 = vmul.f32 %v1039, %v1049
    %v1055 = vmul.f32 %v1040, %v1048
    %1059 = vrot.lane.b32.xlu0 %v1053, 94
    %v1060 = vpop.permute.xlu0 %1059
    %1061 = vrot.lane.b32.xlu0 %v1054, 94
    %v1062 = vpop.permute.xlu0 %1061
    %1063 = vrot.lane.b32.xlu0 %v1055, 94
    %v1064 = vpop.permute.xlu0 %1063
    %v1065 = vsel %vm404, %v1060, %v1062
    %v1066 = vsel %vm404, %v1062, %v1064
    %1069 = vst [vmem:[#allocation3 + $0xd0] sm:$0xff] %v1065
    %1070 = vst [vmem:[#allocation3 + $0xd8] sm:$0xff] %v1066
    %v1071 = vld [vmem:[#allocation2] sm:$0xff]
    %v1072 = vld [vmem:[#allocation2 + $0x8] sm:$0xf]
    %v1075 = vcombine.high %v1071, %v1071
    %v1077 = vcombine.low %v1071, %v1071
    %v1078 = vcombine.low %v1072, %v1072
    %1079 = vrot.lane.b32.xlu0 %v1077, 116
    %v1080 = vpop.permute.xlu0 %1079
    %1081 = vrot.lane.b32.xlu0 %v1071, 116
    %v1082 = vpop.permute.xlu0 %1081
    %1083 = vrot.lane.b32.xlu0 %v1078, 116
    %v1084 = vpop.permute.xlu0 %1083
    %v1085 = vsel %vm155, %v1080, %v1082
    %v1086 = vsel %vm155, %v1082, %v1084
    %v1090 = vsel %vm78, %v1071, %v1085
    %v1091 = vsel %vm78, %v1075, %v1086
    %v1092 = vsel %vm78, %v1072, %v1084
    %v1093 = vld [vmem:[#allocation5 + $0x70] sm:$0xff]
    %v1094 = vld [vmem:[#allocation5 + $0x78] sm:$0xff]
    %1097 = vrot.lane.b32.xlu0 %v1093, 36
    %v1098 = vpop.permute.xlu0 %1097
    %1099 = vrot.lane.b32.xlu0 %v1094, 36
    %v1100 = vpop.permute.xlu0 %1099
    %v1101 = vsel %vm441, %v1098, %v1100
    %v1105 = vmul.f32 %v1090, %v1098
    %v1106 = vmul.f32 %v1091, %v1101
    %v1107 = vmul.f32 %v1092, %v1100
    %1111 = vrot.lane.b32.xlu0 %v1105, 92
    %v1112 = vpop.permute.xlu0 %1111
    %1113 = vrot.lane.b32.xlu0 %v1106, 92
    %v1114 = vpop.permute.xlu0 %1113
    %1115 = vrot.lane.b32.xlu0 %v1107, 92
    %v1116 = vpop.permute.xlu0 %1115
    %v1117 = vsel %vm458, %v1112, %v1114
    %v1118 = vsel %vm458, %v1114, %v1116
    %1121 = vst [vmem:[#allocation3 + $0xf0] sm:$0xff] %v1117
    %1122 = vst [vmem:[#allocation3 + $0xf8] sm:$0xff] %v1118
    %v1123 = vld [vmem:[#allocation2] sm:$0xff]
    %v1124 = vld [vmem:[#allocation2 + $0x8] sm:$0xf]
    %v1127 = vcombine.high %v1123, %v1123
    %v1129 = vcombine.low %v1123, %v1123
    %v1130 = vcombine.low %v1124, %v1124
    %1131 = vrot.lane.b32.xlu0 %v1129, 127
    %v1132 = vpop.permute.xlu0 %1131
    %1133 = vrot.lane.b32.xlu0 %v1123, 127
    %v1134 = vpop.permute.xlu0 %1133
    %1135 = vrot.lane.b32.xlu0 %v1130, 127
    %v1136 = vpop.permute.xlu0 %1135
    %v1137 = vsel %vm73, %v1132, %v1134
    %v1138 = vsel %vm73, %v1134, %v1136
    %v1142 = vsel %vm78, %v1123, %v1137
    %v1143 = vsel %vm78, %v1127, %v1138
    %v1144 = vsel %vm78, %v1124, %v1136
    %v1145 = vld [vmem:[#allocation5 + $0x80] sm:$0xff]
    %v1146 = vld [vmem:[#allocation5 + $0x88] sm:$0xff]
    %1149 = vrot.lane.b32.xlu0 %v1145, 49
    %v1150 = vpop.permute.xlu0 %1149
    %1151 = vrot.lane.b32.xlu0 %v1146, 49
    %v1152 = vpop.permute.xlu0 %1151
    %v1153 = vsel %vm495, %v1150, %v1152
    %v1157 = vmul.f32 %v1142, %v1150
    %v1158 = vmul.f32 %v1143, %v1153
    %v1159 = vmul.f32 %v1144, %v1152
    %1163 = vrot.lane.b32.xlu0 %v1157, 79
    %v1164 = vpop.permute.xlu0 %1163
    %1165 = vrot.lane.b32.xlu0 %v1158, 79
    %v1166 = vpop.permute.xlu0 %1165
    %1167 = vrot.lane.b32.xlu0 %v1159, 79
    %v1168 = vpop.permute.xlu0 %1167
    %v1169 = vsel %vm512, %v1164, %v1166
    %v1170 = vsel %vm512, %v1166, %v1168
    %1173 = vst [vmem:[#allocation3 + $0x110] sm:$0xff] %v1169
    %1174 = vst [vmem:[#allocation3 + $0x118] sm:$0xff] %v1170
    %v1175 = vld [vmem:[#allocation2] sm:$0xff]
    %v1176 = vld [vmem:[#allocation2 + $0x8] sm:$0xf]
    %v1179 = vcombine.high %v1175, %v1175
    %v1181 = vcombine.low %v1175, %v1175
    %v1182 = vcombine.low %v1176, %v1176
    %1183 = vrot.lane.b32.xlu0 %v1181, 127
    %v1184 = vpop.permute.xlu0 %1183
    %1185 = vrot.lane.b32.xlu0 %v1175, 127
    %v1186 = vpop.permute.xlu0 %1185
    %1187 = vrot.lane.b32.xlu0 %v1182, 127
    %v1188 = vpop.permute.xlu0 %1187
    %v1189 = vsel %vm73, %v1184, %v1186
    %v1190 = vsel %vm73, %v1186, %v1188
    %v1194 = vsel %vm78, %v1175, %v1189
    %v1195 = vsel %vm78, %v1179, %v1190
    %v1196 = vsel %vm78, %v1176, %v1188
    %v1197 = vld [vmem:[#allocation5 + $0x90] sm:$0xff]
    %v1198 = vld [vmem:[#allocation5 + $0x98] sm:$0xff]
    %1201 = vrot.lane.b32.xlu0 %v1197, 51
    %v1202 = vpop.permute.xlu0 %1201
    %1203 = vrot.lane.b32.xlu0 %v1198, 51
    %v1204 = vpop.permute.xlu0 %1203
    %v1205 = vsel %vm549, %v1202, %v1204
    %v1209 = vmul.f32 %v1194, %v1202
    %v1210 = vmul.f32 %v1195, %v1205
    %v1211 = vmul.f32 %v1196, %v1204
    %1215 = vrot.lane.b32.xlu0 %v1209, 77
    %v1216 = vpop.permute.xlu0 %1215
    %1217 = vrot.lane.b32.xlu0 %v1210, 77
    %v1218 = vpop.permute.xlu0 %1217
    %1219 = vrot.lane.b32.xlu0 %v1211, 77
    %v1220 = vpop.permute.xlu0 %1219
    %v1221 = vsel %vm566, %v1216, %v1218
    %v1222 = vsel %vm566, %v1218, %v1220
    %1225 = vst [vmem:[#allocation3 + $0x130] sm:$0xff] %v1221
    %1226 = vst [vmem:[#allocation3 + $0x138] sm:$0xff] %v1222
    %v1227 = vld [vmem:[#allocation2] sm:$0xff]
    %v1228 = vld [vmem:[#allocation2 + $0x8] sm:$0xf]
    %v1231 = vcombine.high %v1227, %v1227
    %v1233 = vcombine.low %v1227, %v1227
    %v1234 = vcombine.low %v1228, %v1228
    %1235 = vrot.lane.b32.xlu0 %v1233, 127
    %v1236 = vpop.permute.xlu0 %1235
    %1237 = vrot.lane.b32.xlu0 %v1227, 127
    %v1238 = vpop.permute.xlu0 %1237
    %1239 = vrot.lane.b32.xlu0 %v1234, 127
    %v1240 = vpop.permute.xlu0 %1239
    %v1241 = vsel %vm73, %v1236, %v1238
    %v1242 = vsel %vm73, %v1238, %v1240
    %v1246 = vsel %vm78, %v1227, %v1241
    %v1247 = vsel %vm78, %v1231, %v1242
    %v1248 = vsel %vm78, %v1228, %v1240
    %v1249 = vld [vmem:[#allocation5 + $0xa0] sm:$0xff]
    %v1250 = vld [vmem:[#allocation5 + $0xa8] sm:$0xff]
    %1253 = vrot.lane.b32.xlu0 %v1249, 64
    %v1254 = vpop.permute.xlu0 %1253
    %1255 = vrot.lane.b32.xlu0 %v1250, 64
    %v1256 = vpop.permute.xlu0 %1255
    %v1257 = vsel %vm603, %v1254, %v1256
    %v1261 = vmul.f32 %v1246, %v1254
    %v1262 = vmul.f32 %v1247, %v1257
    %v1263 = vmul.f32 %v1248, %v1256
    %1267 = vrot.lane.b32.xlu0 %v1261, 64
    %v1268 = vpop.permute.xlu0 %1267
    %1269 = vrot.lane.b32.xlu0 %v1262, 64
    %v1270 = vpop.permute.xlu0 %1269
    %1271 = vrot.lane.b32.xlu0 %v1263, 64
    %v1272 = vpop.permute.xlu0 %1271
    %v1273 = vsel %vm603, %v1268, %v1270
    %v1274 = vsel %vm603, %v1270, %v1272
    %1277 = vst [vmem:[#allocation3 + $0x150] sm:$0xff] %v1273
    %1278 = vst [vmem:[#allocation3 + $0x158] sm:$0xff] %v1274
    %v1279 = vld [vmem:[#allocation2] sm:$0xff]
    %v1280 = vld [vmem:[#allocation2 + $0x8] sm:$0xf]
    %v1283 = vcombine.high %v1279, %v1279
    %v1285 = vcombine.low %v1279, %v1279
    %v1286 = vcombine.low %v1280, %v1280
    %1287 = vrot.lane.b32.xlu0 %v1285, 127
    %v1288 = vpop.permute.xlu0 %1287
    %1289 = vrot.lane.b32.xlu0 %v1279, 127
    %v1290 = vpop.permute.xlu0 %1289
    %1291 = vrot.lane.b32.xlu0 %v1286, 127
    %v1292 = vpop.permute.xlu0 %1291
    %v1293 = vsel %vm73, %v1288, %v1290
    %v1294 = vsel %vm73, %v1290, %v1292
    %v1298 = vsel %vm78, %v1279, %v1293
    %v1299 = vsel %vm78, %v1283, %v1294
    %v1300 = vsel %vm78, %v1280, %v1292
    %v1301 = vld [vmem:[#allocation5 + $0xb0] sm:$0xff]
    %v1302 = vld [vmem:[#allocation5 + $0xb8] sm:$0xff]
    %1305 = vrot.lane.b32.xlu0 %v1301, 66
    %v1306 = vpop.permute.xlu0 %1305
    %1307 = vrot.lane.b32.xlu0 %v1302, 66
    %v1308 = vpop.permute.xlu0 %1307
    %v1309 = vsel %vm656, %v1306, %v1308
    %v1313 = vmul.f32 %v1298, %v1306
    %v1314 = vmul.f32 %v1299, %v1309
    %v1315 = vmul.f32 %v1300, %v1308
    %1319 = vrot.lane.b32.xlu0 %v1313, 62
    %v1320 = vpop.permute.xlu0 %1319
    %1321 = vrot.lane.b32.xlu0 %v1314, 62
    %v1322 = vpop.permute.xlu0 %1321
    %1323 = vrot.lane.b32.xlu0 %v1315, 62
    %v1324 = vpop.permute.xlu0 %1323
    %v1325 = vsel %vm673, %v1320, %v1322
    %v1326 = vsel %vm673, %v1322, %v1324
    %1329 = vst [vmem:[#allocation3 + $0x170] sm:$0xff] %v1325
    %1330 = vst [vmem:[#allocation3 + $0x178] sm:$0xff] %v1326
    %v1331 = vld [vmem:[#allocation2] sm:$0xff]
    %v1332 = vld [vmem:[#allocation2 + $0x8] sm:$0xf]
    %v1334 = vcombine.high %v1331, %v1331
    %v1336 = vsel %vm78, %v1331, 0.0
    %v1337 = vsel %vm78, %v1334, 0.0
    %v1338 = vsel %vm78, %v1332, 0.0
    %v1339 = vld [vmem:[#allocation5 + $0xc0] sm:$0xff]
    %v1340 = vld [vmem:[#allocation5 + $0xc8] sm:$0xff]
    %1343 = vrot.lane.b32.xlu0 %v1339, 68
    %v1344 = vpop.permute.xlu0 %1343
    %1345 = vrot.lane.b32.xlu0 %v1340, 68
    %v1346 = vpop.permute.xlu0 %1345
    %v1347 = vsel %vm696, %v1344, %v1346
    %v1351 = vmul.f32 %v1336, %v1344
    %v1352 = vmul.f32 %v1337, %v1347
    %v1353 = vmul.f32 %v1338, %v1346
    %1357 = vrot.lane.b32.xlu0 %v1351, 60
    %v1358 = vpop.permute.xlu0 %1357
    %1359 = vrot.lane.b32.xlu0 %v1352, 60
    %v1360 = vpop.permute.xlu0 %1359
    %1361 = vrot.lane.b32.xlu0 %v1353, 60
    %v1362 = vpop.permute.xlu0 %1361
    %v1363 = vsel %vm713, %v1358, %v1360
    %v1364 = vsel %vm713, %v1360, %v1362
    %1367 = vst [vmem:[#allocation3 + $0x190] sm:$0xff] %v1363
    %1368 = vst [vmem:[#allocation3 + $0x198] sm:$0xff] %v1364
    %v1369 = vld [vmem:[%s1] sm:$0xff]
    %v1370 = vld [vmem:[%s1 + $0x8] sm:$0xff]
    %v1371 = vld [vmem:[#allocation3] sm:$0xff]
    %v1372 = vld [vmem:[#allocation3 + $0x8] sm:$0xff]
    %v1373 = vld [vmem:[#allocation3 + $0x10] sm:$0xff]
    %v1374 = vld [vmem:[#allocation3 + $0x18] sm:$0xff]
    %v1375 = vld [vmem:[#allocation3 + $0x20] sm:$0xff]
    %v1376 = vld [vmem:[#allocation3 + $0x28] sm:$0xff]
    %v1377 = vld [vmem:[#allocation3 + $0x30] sm:$0xff]
    %v1378 = vld [vmem:[#allocation3 + $0x38] sm:$0xff]
    %v1379 = vld [vmem:[#allocation3 + $0x40] sm:$0xff]
    %v1380 = vld [vmem:[#allocation3 + $0x48] sm:$0xff]
    %v1381 = vld [vmem:[#allocation3 + $0x50] sm:$0xff]
    %v1382 = vld [vmem:[#allocation3 + $0x58] sm:$0xff]
    %v1383 = vld [vmem:[#allocation3 + $0x60] sm:$0xff]
    %v1384 = vld [vmem:[#allocation3 + $0x68] sm:$0xff]
    %v1385 = vld [vmem:[#allocation3 + $0x70] sm:$0xff]
    %v1386 = vld [vmem:[#allocation3 + $0x78] sm:$0xff]
    %v1387 = vld [vmem:[#allocation3 + $0x80] sm:$0xff]
    %v1388 = vld [vmem:[#allocation3 + $0x88] sm:$0xff]
    %v1389 = vld [vmem:[#allocation3 + $0x90] sm:$0xff]
    %v1390 = vld [vmem:[#allocation3 + $0x98] sm:$0xff]
    %v1391 = vld [vmem:[#allocation3 + $0xa0] sm:$0xff]
    %v1392 = vld [vmem:[#allocation3 + $0xa8] sm:$0xff]
    %v1393 = vld [vmem:[#allocation3 + $0xb0] sm:$0xff]
    %v1394 = vld [vmem:[#allocation3 + $0xb8] sm:$0xff]
    %v1395 = vld [vmem:[#allocation3 + $0xc0] sm:$0xff]
    %v1396 = vld [vmem:[#allocation3 + $0xc8] sm:$0xff]
    %v1397 = vld [vmem:[#allocation3 + $0xd0] sm:$0xff]
    %v1398 = vld [vmem:[#allocation3 + $0xd8] sm:$0xff]
    %v1399 = vld [vmem:[#allocation3 + $0xe0] sm:$0xff]
    %v1400 = vld [vmem:[#allocation3 + $0xe8] sm:$0xff]
    %v1401 = vld [vmem:[#allocation3 + $0xf0] sm:$0xff]
    %v1402 = vld [vmem:[#allocation3 + $0xf8] sm:$0xff]
    %v1403 = vld [vmem:[#allocation3 + $0x100] sm:$0xff]
    %v1404 = vld [vmem:[#allocation3 + $0x108] sm:$0xff]
    %v1405 = vld [vmem:[#allocation3 + $0x110] sm:$0xff]
    %v1406 = vld [vmem:[#allocation3 + $0x118] sm:$0xff]
    %v1407 = vld [vmem:[#allocation3 + $0x120] sm:$0xff]
    %v1408 = vld [vmem:[#allocation3 + $0x128] sm:$0xff]
    %v1409 = vld [vmem:[#allocation3 + $0x130] sm:$0xff]
    %v1410 = vld [vmem:[#allocation3 + $0x138] sm:$0xff]
    %v1411 = vld [vmem:[#allocation3 + $0x140] sm:$0xff]
    %v1412 = vld [vmem:[#allocation3 + $0x148] sm:$0xff]
    %v1413 = vld [vmem:[#allocation3 + $0x150] sm:$0xff]
    %v1414 = vld [vmem:[#allocation3 + $0x158] sm:$0xff]
    %v1415 = vld [vmem:[#allocation3 + $0x160] sm:$0xff]
    %v1416 = vld [vmem:[#allocation3 + $0x168] sm:$0xff]
    %v1417 = vld [vmem:[#allocation3 + $0x170] sm:$0xff]
    %v1418 = vld [vmem:[#allocation3 + $0x178] sm:$0xff]
    %v1419 = vld [vmem:[#allocation3 + $0x180] sm:$0xff]
    %v1420 = vld [vmem:[#allocation3 + $0x188] sm:$0xff]
    %v1421 = vld [vmem:[#allocation3 + $0x190] sm:$0xff]
    %v1422 = vld [vmem:[#allocation3 + $0x198] sm:$0xff]
    %v1423 = vld [vmem:[%s2] sm:$0xff]
    %v1424 = vld [vmem:[%s2 + $0x8] sm:$0xff]
    %1426 = vset.pattern.permute.xlu0 0
    %1427 = vperm.xlu0 %1426, %v1423
    %v1428 = vpop.permute.xlu0 %1427
    %1431 = vset.pattern.permute.xlu0 0
    %1432 = vperm.xlu0 %1431, %v1424
    %v1433 = vpop.permute.xlu0 %1432
    %vm1435 = vcmask 850944
    %v1437 = vsel %vm1435, %v1369, 0
    %v1440 = vsel %vm1435, %v1370, 0
    %1442 = vmatprep.subr.mxu0 %v1372
    %1443 = vmatpush1.msra.mxu0 %v1371
    %1444 = vmatprep.subr.mxu0 %v1376
    %1445 = vmatpush1.msra.mxu0 %v1375
    %1446 = vmatprep.subr.mxu0 %v1380
    %1447 = vmatpush1.msra.mxu0 %v1379
    %1448 = vmatprep.subr.mxu0 %v1384
    %1449 = vmatpush1.msra.mxu0 %v1383
    %1450 = vmatprep.subr.mxu0 %v1388
    %1451 = vmatpush1.msra.mxu0 %v1387
    %1452 = vmatprep.subr.mxu0 %v1392
    %1453 = vmatpush1.msra.mxu0 %v1391
    %1454 = vmatprep.subr.mxu0 %v1396
    %1455 = vmatpush1.msra.mxu0 %v1395
    %1456 = vmatprep.subr.mxu0 %v1400
    %1457 = vmatpush1.msra.mxu0 %v1399
    %1458 = vmatprep.subr.mxu0 %v1404
    %1459 = vmatpush1.msra.mxu0 %v1403
    %1460 = vmatprep.subr.mxu0 %v1408
    %1461 = vmatpush1.msra.mxu0 %v1407
    %1462 = vmatprep.subr.mxu0 %v1412
    %1463 = vmatpush1.msra.mxu0 %v1411
    %1464 = vmatprep.subr.mxu0 %v1416
    %1465 = vmatpush1.msra.mxu0 %v1415
    %1466 = vmatprep.subr.mxu0 %v1420
    %1467 = vmatpush1.msra.mxu0 %v1419
    %1468 = vmatprep.subr.mxu0 0.0
    %1469 = vmatpush1.msra.mxu0 0.0
    %1470 = vmatprep.subr.mxu0 0.0
    %1471 = vmatpush1.msra.mxu0 0.0
    %1472 = vmatprep.subr.mxu0 0.0
    %1473 = vmatpush1.msra.mxu0 0.0
    %1474 = vmatprep.subr.mxu0 0.0
    %1475 = vmatpush1.msra.mxu0 0.0
    %1476 = vmatprep.subr.mxu0 0.0
    %1477 = vmatpush1.msra.mxu0 0.0
    %1478 = vmatprep.subr.mxu0 0.0
    %1479 = vmatpush1.msra.mxu0 0.0
    %1480 = vmatprep.subr.mxu0 0.0
    %1481 = vmatpush1.msra.mxu0 0.0
    %1482 = vmatprep.subr.mxu0 0.0
    %1483 = vmatpush1.msra.mxu0 0.0
    %1484 = vmatprep.subr.mxu0 0.0
    %1485 = vmatpush1.msra.mxu0 0.0
    %1486 = vmatprep.subr.mxu0 0.0
    %1487 = vmatpush1.msra.mxu0 0.0
    %1488 = vmatprep.subr.mxu0 0.0
    %1489 = vmatpush1.msra.mxu0 0.0
    %1490 = vmatprep.subr.mxu0 0.0
    %1491 = vmatpush1.msra.mxu0 0.0
    %1492 = vmatprep.subr.mxu0 0.0
    %1493 = vmatpush1.msra.mxu0 0.0
    %1494 = vmatprep.subr.mxu0 0.0
    %1495 = vmatpush1.msra.mxu0 0.0
    %1496 = vmatprep.subr.mxu0 0.0
    %1497 = vmatpush1.msra.mxu0 0.0
    %1498 = vmatprep.subr.mxu0 0.0
    %1499 = vmatpush1.msra.mxu0 0.0
    %1500 = vmatprep.subr.mxu0 0.0
    %1501 = vmatpush1.msra.mxu0 0.0
    %1502 = vmatprep.subr.mxu0 0.0
    %1503 = vmatpush1.msra.mxu0 0.0
    %1504 = vmatprep.subr.mxu0 0.0
    %1505 = vmatpush1.msra.mxu0 0.0
    %1506 = vmatprep.mubr.f32.mxu0 0.0
    %1507 = vmatmul.mubr.f32.gmra.mrb[0].mxu0 %v1437
    %v1508 = vpop.f32.mrb[0].mxu0
    %v1509 = vadd.f32 %v1428, %v1508
    %v1510 = vpop.f32.mrb[0].mxu0
    %v1511 = vadd.f32 %v1428, %v1510
    %1512 = vmatprep.mubr.f32.mxu0 0.0
    %1513 = vmatmul.mubr.f32.gmra.mrb[0].mxu0 %v1440
    %v1514 = vpop.f32.mrb[0].mxu0
    %v1515 = vadd.f32 %v1433, %v1514
    %v1516 = vpop.f32.mrb[0].mxu0
    %v1517 = vadd.f32 %v1433, %v1516
    %1518 = vdwg.mxu0
    %1519 = vmatprep.subr.mxu0 %v1374
    %1520 = vmatpush1.msra.mxu0 %v1373
    %1521 = vmatprep.subr.mxu0 %v1378
    %1522 = vmatpush1.msra.mxu0 %v1377
    %1523 = vmatprep.subr.mxu0 %v1382
    %1524 = vmatpush1.msra.mxu0 %v1381
    %1525 = vmatprep.subr.mxu0 %v1386
    %1526 = vmatpush1.msra.mxu0 %v1385
    %1527 = vmatprep.subr.mxu0 %v1390
    %1528 = vmatpush1.msra.mxu0 %v1389
    %1529 = vmatprep.subr.mxu0 %v1394
    %1530 = vmatpush1.msra.mxu0 %v1393
    %1531 = vmatprep.subr.mxu0 %v1398
    %1532 = vmatpush1.msra.mxu0 %v1397
    %1533 = vmatprep.subr.mxu0 %v1402
    %1534 = vmatpush1.msra.mxu0 %v1401
    %1535 = vmatprep.subr.mxu0 %v1406
    %1536 = vmatpush1.msra.mxu0 %v1405
    %1537 = vmatprep.subr.mxu0 %v1410
    %1538 = vmatpush1.msra.mxu0 %v1409
    %1539 = vmatprep.subr.mxu0 %v1414
    %1540 = vmatpush1.msra.mxu0 %v1413
    %1541 = vmatprep.subr.mxu0 %v1418
    %1542 = vmatpush1.msra.mxu0 %v1417
    %1543 = vmatprep.subr.mxu0 %v1422
    %1544 = vmatpush1.msra.mxu0 %v1421
    %1545 = vmatprep.subr.mxu0 0.0
    %1546 = vmatpush1.msra.mxu0 0.0
    %1547 = vmatprep.subr.mxu0 0.0
    %1548 = vmatpush1.msra.mxu0 0.0
    %1549 = vmatprep.subr.mxu0 0.0
    %1550 = vmatpush1.msra.mxu0 0.0
    %1551 = vmatprep.subr.mxu0 0.0
    %1552 = vmatpush1.msra.mxu0 0.0
    %1553 = vmatprep.subr.mxu0 0.0
    %1554 = vmatpush1.msra.mxu0 0.0
    %1555 = vmatprep.subr.mxu0 0.0
    %1556 = vmatpush1.msra.mxu0 0.0
    %1557 = vmatprep.subr.mxu0 0.0
    %1558 = vmatpush1.msra.mxu0 0.0
    %1559 = vmatprep.subr.mxu0 0.0
    %1560 = vmatpush1.msra.mxu0 0.0
    %1561 = vmatprep.subr.mxu0 0.0
    %1562 = vmatpush1.msra.mxu0 0.0
    %1563 = vmatprep.subr.mxu0 0.0
    %1564 = vmatpush1.msra.mxu0 0.0
    %1565 = vmatprep.subr.mxu0 0.0
    %1566 = vmatpush1.msra.mxu0 0.0
    %1567 = vmatprep.subr.mxu0 0.0
    %1568 = vmatpush1.msra.mxu0 0.0
    %1569 = vmatprep.subr.mxu0 0.0
    %1570 = vmatpush1.msra.mxu0 0.0
    %1571 = vmatprep.subr.mxu0 0.0
    %1572 = vmatpush1.msra.mxu0 0.0
    %1573 = vmatprep.subr.mxu0 0.0
    %1574 = vmatpush1.msra.mxu0 0.0
    %1575 = vmatprep.subr.mxu0 0.0
    %1576 = vmatpush1.msra.mxu0 0.0
    %1577 = vmatprep.subr.mxu0 0.0
    %1578 = vmatpush1.msra.mxu0 0.0
    %1579 = vmatprep.subr.mxu0 0.0
    %1580 = vmatpush1.msra.mxu0 0.0
    %1581 = vmatprep.subr.mxu0 0.0
    %1582 = vmatpush1.msra.mxu0 0.0
    %1583 = vmatprep.mubr.f32.mxu0 0.0
    %1584 = vmatmul.mubr.f32.gmra.mrb[0].mxu0 %v1437
    %v1585 = vpop.f32.mrb[0].mxu0
    %v1586 = vadd.f32 %v1428, %v1585
    %v1587 = vpop.f32.mrb[0].mxu0
    %v1588 = vadd.f32 %v1428, %v1587
    %1589 = vmatprep.mubr.f32.mxu0 0.0
    %1590 = vmatmul.mubr.f32.gmra.mrb[0].mxu0 %v1440
    %v1591 = vpop.f32.mrb[0].mxu0
    %v1592 = vadd.f32 %v1433, %v1591
    %v1593 = vpop.f32.mrb[0].mxu0
    %v1594 = vadd.f32 %v1433, %v1593
    %1595 = vdwg.mxu0
    %1596 = vst [vmem:[#allocation4] sm:$0xff] %v1509
    %1597 = vst [vmem:[#allocation4 + $0x8] sm:$0xff] %v1511
    %1598 = vst [vmem:[#allocation4 + $0x10] sm:$0xff] %v1586
    %1599 = vst [vmem:[#allocation4 + $0x18] sm:$0xff] %v1588
    %1600 = vst [vmem:[#allocation4 + $0x20] sm:$0xff] %v1515
    %1601 = vst [vmem:[#allocation4 + $0x28] sm:$0xff] %v1517
    %1602 = vst [vmem:[#allocation4 + $0x30] sm:$0xff] %v1592
    %1603 = vst [vmem:[#allocation4 + $0x38] sm:$0xff] %v1594
    %v1604 = vld [vmem:[#allocation4] sm:$0xff]
    %v1605 = vld [vmem:[#allocation4 + $0x8] sm:$0xff]
    %v1606 = vld [vmem:[#allocation4 + $0x20] sm:$0xff]
    %v1607 = vld [vmem:[#allocation4 + $0x28] sm:$0xff]
    %v1608 = vadd.f32 %v1604, %v1605
    %1609 = vadd.xlane.f32.xlu0 %v1608
    %v1610 = vpop.xlane.xlu0 %1609
    %v1611 = vadd.f32 %v1606, %v1607
    %1612 = vadd.xlane.f32.xlu0 %v1611
    %v1613 = vpop.xlane.xlu0 %1612
    %v1614 = vrcp.pop 256.0
    %v1615 = vmul.f32 %v1610, %v1614
    %v1616 = vmul.f32 %v1613, %v1614
    %v1617 = vsub.f32 %v1604, %v1615
    %v1618 = vsub.f32 %v1605, %v1615
    %v1619 = vsub.f32 %v1606, %v1616
    %v1620 = vsub.f32 %v1607, %v1616
    %v1621 = vmul.f32 %v1617, %v1617
    %v1622 = vmul.f32 %v1618, %v1618
    %v1623 = vmul.f32 %v1619, %v1619
    %v1624 = vmul.f32 %v1620, %v1620
    %v1625 = vadd.f32 %v1621, %v1622
    %1626 = vadd.xlane.f32.xlu0 %v1625
    %v1627 = vpop.xlane.xlu0 %1626
    %v1628 = vadd.f32 %v1623, %v1624
    %1629 = vadd.xlane.f32.xlu0 %v1628
    %v1630 = vpop.xlane.xlu0 %1629
    %v1631 = vmul.f32 %v1627, %v1614
    %v1632 = vmul.f32 %v1630, %v1614
    %v1633 = vadd.f32 %v1631, 1e-05
    %v1634 = vadd.f32 %v1632, 1e-05
    %v1635 = vrsqrt.pop %v1633
    %v1636 = vrsqrt.pop %v1634
    %v1637 = vmul.f32 %v1617, %v1635
    %v1638 = vmul.f32 %v1618, %v1635
    %v1639 = vmul.f32 %v1619, %v1636
    %v1640 = vmul.f32 %v1620, %v1636
    %vm1641 = vcmp.gt.f32.partialorder %v1637, 0.0
    %vm1642 = vcmp.gt.f32.partialorder %v1638, 0.0
    %vm1643 = vcmp.gt.f32.partialorder %v1639, 0.0
    %vm1644 = vcmp.gt.f32.partialorder %v1640, 0.0
    %v1645 = vmul.f32 %v1637, 0.01
    %v1646 = vmul.f32 %v1638, 0.01
    %v1647 = vmul.f32 %v1639, 0.01
    %v1648 = vmul.f32 %v1640, 0.01
    %v1649 = vsel %vm1641, %v1637, %v1645
    %v1650 = vsel %vm1642, %v1638, %v1646
    %v1651 = vsel %vm1643, %v1639, %v1647
    %v1652 = vsel %vm1644, %v1640, %v1648
    %1653 = vst [vmem:[#allocation4] sm:$0xff] %v1649
    %1654 = vst [vmem:[#allocation4 + $0x8] sm:$0xff] %v1650
    %1655 = vst [vmem:[#allocation4 + $0x20] sm:$0xff] %v1651
    %1656 = vst [vmem:[#allocation4 + $0x28] sm:$0xff] %v1652
    %v1657 = vadd.f32 %v1649, %v1651
    %v1658 = vadd.f32 %v1650, %v1652
    %v1659 = vadd.f32 %v1657, %v1658
    %1660 = vadd.xlane.f32.xlu0 %v1659
    %v1661 = vpop.xlane.xlu0 %1660
    %v1662 = vmul.f32 %v1661, %v1614
    %v1663 = vld [vmem:[#allocation4 + $0x10] sm:$0xff]
    %v1664 = vld [vmem:[#allocation4 + $0x18] sm:$0xff]
    %v1665 = vld [vmem:[#allocation4 + $0x30] sm:$0xff]
    %v1666 = vld [vmem:[#allocation4 + $0x38] sm:$0xff]
    %v1667 = vadd.f32 %v1663, %v1664
    %1668 = vadd.xlane.f32.xlu0 %v1667
    %v1669 = vpop.xlane.xlu0 %1668
    %v1670 = vadd.f32 %v1665, %v1666
    %1671 = vadd.xlane.f32.xlu0 %v1670
    %v1672 = vpop.xlane.xlu0 %1671
    %v1673 = vmul.f32 %v1669, %v1614
    %v1674 = vmul.f32 %v1672, %v1614
    %v1675 = vsub.f32 %v1663, %v1673
    %v1676 = vsub.f32 %v1664, %v1673
    %v1677 = vsub.f32 %v1665, %v1674
    %v1678 = vsub.f32 %v1666, %v1674
    %v1679 = vmul.f32 %v1675, %v1675
    %v1680 = vmul.f32 %v1676, %v1676
    %v1681 = vmul.f32 %v1677, %v1677
    %v1682 = vmul.f32 %v1678, %v1678
    %v1683 = vadd.f32 %v1679, %v1680
    %1684 = vadd.xlane.f32.xlu0 %v1683
    %v1685 = vpop.xlane.xlu0 %1684
    %v1686 = vadd.f32 %v1681, %v1682
    %1687 = vadd.xlane.f32.xlu0 %v1686
    %v1688 = vpop.xlane.xlu0 %1687
    %v1689 = vmul.f32 %v1685, %v1614
    %v1690 = vmul.f32 %v1688, %v1614
    %v1691 = vadd.f32 %v1689, 1e-05
    %v1692 = vadd.f32 %v1690, 1e-05
    %v1693 = vrsqrt.pop %v1691
    %v1694 = vrsqrt.pop %v1692
    %v1695 = vmul.f32 %v1675, %v1693
    %v1696 = vmul.f32 %v1676, %v1693
    %v1697 = vmul.f32 %v1677, %v1694
    %v1698 = vmul.f32 %v1678, %v1694
    %vm1699 = vcmp.gt.f32.partialorder %v1695, 0.0
    %vm1700 = vcmp.gt.f32.partialorder %v1696, 0.0
    %vm1701 = vcmp.gt.f32.partialorder %v1697, 0.0
    %vm1702 = vcmp.gt.f32.partialorder %v1698, 0.0
    %v1703 = vmul.f32 %v1695, 0.01
    %v1704 = vmul.f32 %v1696, 0.01
    %v1705 = vmul.f32 %v1697, 0.01
    %v1706 = vmul.f32 %v1698, 0.01
    %v1707 = vsel %vm1699, %v1695, %v1703
    %v1708 = vsel %vm1700, %v1696, %v1704
    %v1709 = vsel %vm1701, %v1697, %v1705
    %v1710 = vsel %vm1702, %v1698, %v1706
    %1711 = vst [vmem:[#allocation4 + $0x10] sm:$0xff] %v1707
    %1712 = vst [vmem:[#allocation4 + $0x18] sm:$0xff] %v1708
    %1713 = vst [vmem:[#allocation4 + $0x30] sm:$0xff] %v1709
    %1714 = vst [vmem:[#allocation4 + $0x38] sm:$0xff] %v1710
    %v1715 = vadd.f32 %v1707, %v1709
    %v1716 = vadd.f32 %v1708, %v1710
    %v1717 = vadd.f32 %v1715, %v1716
    %1718 = vadd.xlane.f32.xlu0 %v1717
    %v1719 = vpop.xlane.xlu0 %1718
    %v1720 = vmul.f32 %v1719, %v1614
    %vm1721 = vcmask 7168
    %v1722 = vsel %vm1721, %v1662, %v1720
    %v1723 = vsel %vm117, %v1722, 0.0
    %v1724 = vld [vmem:[%s4] sm:$0xff]
    %v1725 = vld [vmem:[%s4 + $0x8] sm:$0xff]
    %v1726 = vld [vmem:[%s4 + $0x10] sm:$0xff]
    %v1727 = vld [vmem:[%s4 + $0x18] sm:$0xff]
    %vm1728 = vcmask 64512
    %v1730 = vsel %vm1728, %v1724, 0
    %v1733 = vsel %vm1728, %v1725, 0
    %v1736 = vsel %vm1728, %v1726, 0
    %v1739 = vsel %vm1728, %v1727, 0
    %1741 = vmatprep.subr.mxu0 0.0
    %1742 = vmatpush1.msra.mxu0 %v1723
    %1743 = vmatprep.subr.mxu0 0.0
    %1744 = vmatpush1.msra.mxu0 0.0
    %1745 = vmatprep.subr.mxu0 0.0
    %1746 = vmatpush1.msra.mxu0 0.0
    %1747 = vmatprep.subr.mxu0 0.0
    %1748 = vmatpush1.msra.mxu0 0.0
    %1749 = vmatprep.subr.mxu0 0.0
    %1750 = vmatpush1.msra.mxu0 0.0
    %1751 = vmatprep.subr.mxu0 0.0
    %1752 = vmatpush1.msra.mxu0 0.0
    %1753 = vmatprep.subr.mxu0 0.0
    %1754 = vmatpush1.msra.mxu0 0.0
    %1755 = vmatprep.subr.mxu0 0.0
    %1756 = vmatpush1.msra.mxu0 0.0
    %1757 = vmatprep.subr.mxu0 0.0
    %1758 = vmatpush1.msra.mxu0 0.0
    %1759 = vmatprep.subr.mxu0 0.0
    %1760 = vmatpush1.msra.mxu0 0.0
    %1761 = vmatprep.subr.mxu0 0.0
    %1762 = vmatpush1.msra.mxu0 0.0
    %1763 = vmatprep.subr.mxu0 0.0
    %1764 = vmatpush1.msra.mxu0 0.0
    %1765 = vmatprep.subr.mxu0 0.0
    %1766 = vmatpush1.msra.mxu0 0.0
    %1767 = vmatprep.subr.mxu0 0.0
    %1768 = vmatpush1.msra.mxu0 0.0
    %1769 = vmatprep.subr.mxu0 0.0
    %1770 = vmatpush1.msra.mxu0 0.0
    %1771 = vmatprep.subr.mxu0 0.0
    %1772 = vmatpush1.msra.mxu0 0.0
    %1773 = vmatprep.subr.mxu0 0.0
    %1774 = vmatpush1.msra.mxu0 0.0
    %1775 = vmatprep.subr.mxu0 0.0
    %1776 = vmatpush1.msra.mxu0 0.0
    %1777 = vmatprep.subr.mxu0 0.0
    %1778 = vmatpush1.msra.mxu0 0.0
    %1779 = vmatprep.subr.mxu0 0.0
    %1780 = vmatpush1.msra.mxu0 0.0
    %1781 = vmatprep.subr.mxu0 0.0
    %1782 = vmatpush1.msra.mxu0 0.0
    %1783 = vmatprep.subr.mxu0 0.0
    %1784 = vmatpush1.msra.mxu0 0.0
    %1785 = vmatprep.subr.mxu0 0.0
    %1786 = vmatpush1.msra.mxu0 0.0
    %1787 = vmatprep.subr.mxu0 0.0
    %1788 = vmatpush1.msra.mxu0 0.0
    %1789 = vmatprep.subr.mxu0 0.0
    %1790 = vmatpush1.msra.mxu0 0.0
    %1791 = vmatprep.subr.mxu0 0.0
    %1792 = vmatpush1.msra.mxu0 0.0
    %1793 = vmatprep.subr.mxu0 0.0
    %1794 = vmatpush1.msra.mxu0 0.0
    %1795 = vmatprep.subr.mxu0 0.0
    %1796 = vmatpush1.msra.mxu0 0.0
    %1797 = vmatprep.subr.mxu0 0.0
    %1798 = vmatpush1.msra.mxu0 0.0
    %1799 = vmatprep.subr.mxu0 0.0
    %1800 = vmatpush1.msra.mxu0 0.0
    %1801 = vmatprep.subr.mxu0 0.0
    %1802 = vmatpush1.msra.mxu0 0.0
    %1803 = vmatprep.subr.mxu0 0.0
    %1804 = vmatpush1.msra.mxu0 0.0
    %1805 = vmatprep.mubr.f32.mxu0 0.0
    %1806 = vmatmul.mubr.f32.gmra.mrb[0].mxu0 %v1730
    %v1807 = vpop.f32.mrb[0].mxu0
    %v1808 = vadd.f32 0.0, %v1807
    %v1809 = vpop.f32.mrb[0].mxu0
    %1810 = vmatprep.mubr.f32.mxu0 0.0
    %1811 = vmatmul.mubr.f32.gmra.mrb[0].mxu0 %v1733
    %v1812 = vpop.f32.mrb[0].mxu0
    %v1813 = vadd.f32 0.0, %v1812
    %v1814 = vpop.f32.mrb[0].mxu0
    %1815 = vmatprep.mubr.f32.mxu0 0.0
    %1816 = vmatmul.mubr.f32.gmra.mrb[0].mxu0 %v1736
    %v1817 = vpop.f32.mrb[0].mxu0
    %v1818 = vadd.f32 0.0, %v1817
    %v1819 = vpop.f32.mrb[0].mxu0
    %1820 = vmatprep.mubr.f32.mxu0 0.0
    %1821 = vmatmul.mubr.f32.gmra.mrb[0].mxu0 %v1739
    %v1822 = vpop.f32.mrb[0].mxu0
    %v1823 = vadd.f32 0.0, %v1822
    %v1824 = vpop.f32.mrb[0].mxu0
    %1825 = vdwg.mxu0
    %v1826 = vmax.f32 %v1808, 0.0
    %v1827 = vmax.f32 %v1813, 0.0
    %v1828 = vmax.f32 %v1818, 0.0
    %v1829 = vmax.f32 %v1823, 0.0
    %v1830 = vld [vmem:[%s5] sm:$0xff]
    %v1831 = vld [vmem:[%s5 + $0x8] sm:$0xff]
    %v1833 = vsel %vm334, %v1830, 0
    %v1836 = vsel %vm334, %v1831, 0
    %1838 = vmatprep.subr.mxu0 0.0
    %1839 = vmatpush1.msra.mxu0 %v1826
    %1840 = vmatprep.subr.mxu0 0.0
    %1841 = vmatpush1.msra.mxu0 %v1827
    %1842 = vmatprep.subr.mxu0 0.0
    %1843 = vmatpush1.msra.mxu0 %v1828
    %1844 = vmatprep.subr.mxu0 0.0
    %1845 = vmatpush1.msra.mxu0 %v1829
    %1846 = vmatprep.subr.mxu0 0.0
    %1847 = vmatpush1.msra.mxu0 0.0
    %1848 = vmatprep.subr.mxu0 0.0
    %1849 = vmatpush1.msra.mxu0 0.0
    %1850 = vmatprep.subr.mxu0 0.0
    %1851 = vmatpush1.msra.mxu0 0.0
    %1852 = vmatprep.subr.mxu0 0.0
    %1853 = vmatpush1.msra.mxu0 0.0
    %1854 = vmatprep.subr.mxu0 0.0
    %1855 = vmatpush1.msra.mxu0 0.0
    %1856 = vmatprep.subr.mxu0 0.0
    %1857 = vmatpush1.msra.mxu0 0.0
    %1858 = vmatprep.subr.mxu0 0.0
    %1859 = vmatpush1.msra.mxu0 0.0
    %1860 = vmatprep.subr.mxu0 0.0
    %1861 = vmatpush1.msra.mxu0 0.0
    %1862 = vmatprep.subr.mxu0 0.0
    %1863 = vmatpush1.msra.mxu0 0.0
    %1864 = vmatprep.subr.mxu0 0.0
    %1865 = vmatpush1.msra.mxu0 0.0
    %1866 = vmatprep.subr.mxu0 0.0
    %1867 = vmatpush1.msra.mxu0 0.0
    %1868 = vmatprep.subr.mxu0 0.0
    %1869 = vmatpush1.msra.mxu0 0.0
    %1870 = vmatprep.subr.mxu0 0.0
    %1871 = vmatpush1.msra.mxu0 0.0
    %1872 = vmatprep.subr.mxu0 0.0
    %1873 = vmatpush1.msra.mxu0 0.0
    %1874 = vmatprep.subr.mxu0 0.0
    %1875 = vmatpush1.msra.mxu0 0.0
    %1876 = vmatprep.subr.mxu0 0.0
    %1877 = vmatpush1.msra.mxu0 0.0
    %1878 = vmatprep.subr.mxu0 0.0
    %1879 = vmatpush1.msra.mxu0 0.0
    %1880 = vmatprep.subr.mxu0 0.0
    %1881 = vmatpush1.msra.mxu0 0.0
    %1882 = vmatprep.subr.mxu0 0.0
    %1883 = vmatpush1.msra.mxu0 0.0
    %1884 = vmatprep.subr.mxu0 0.0
    %1885 = vmatpush1.msra.mxu0 0.0
    %1886 = vmatprep.subr.mxu0 0.0
    %1887 = vmatpush1.msra.mxu0 0.0
    %1888 = vmatprep.subr.mxu0 0.0
    %1889 = vmatpush1.msra.mxu0 0.0
    %1890 = vmatprep.subr.mxu0 0.0
    %1891 = vmatpush1.msra.mxu0 0.0
    %1892 = vmatprep.subr.mxu0 0.0
    %1893 = vmatpush1.msra.mxu0 0.0
    %1894 = vmatprep.subr.mxu0 0.0
    %1895 = vmatpush1.msra.mxu0 0.0
    %1896 = vmatprep.subr.mxu0 0.0
    %1897 = vmatpush1.msra.mxu0 0.0
    %1898 = vmatprep.subr.mxu0 0.0
    %1899 = vmatpush1.msra.mxu0 0.0
    %1900 = vmatprep.subr.mxu0 0.0
    %1901 = vmatpush1.msra.mxu0 0.0
    %1902 = vmatprep.mubr.f32.mxu0 0.0
    %1903 = vmatmul.mubr.f32.gmra.mrb[0].mxu0 %v1833
    %v1904 = vpop.f32.mrb[0].mxu0
    %v1905 = vadd.f32 0.0, %v1904
    %v1906 = vpop.f32.mrb[0].mxu0
    %1907 = vmatprep.mubr.f32.mxu0 0.0
    %1908 = vmatmul.mubr.f32.gmra.mrb[0].mxu0 %v1836
    %v1909 = vpop.f32.mrb[0].mxu0
    %v1910 = vadd.f32 0.0, %v1909
    %v1911 = vpop.f32.mrb[0].mxu0
    %1912 = vdwg.mxu0
    %v1913 = vmax.f32 %v1905, %v1910
    %v1914 = vsub.f32 %v1905, %v1913
    %v1915 = vmul.f32 %v1914, 1.442695
    %v1916 = vpow.pop %v1915
    %v1917 = vsub.f32 %v1910, %v1913
    %v1918 = vmul.f32 %v1917, 1.442695
    %v1919 = vpow.pop %v1918
    %v1920 = vadd.f32 %v1916, %v1919
    %v1921 = vrcp.pop %v1920
    %v1922 = vmul.f32 1.0, %v1921
    %v1923 = vmul.f32 %v1916, %v1922
    %v1924 = vmul.f32 %v1919, %v1922
    %v1925 = vld [vmem:[#allocation4] sm:$0xff]
    %v1926 = vld [vmem:[#allocation4 + $0x8] sm:$0xff]
    %v1927 = vld [vmem:[#allocation4 + $0x20] sm:$0xff]
    %v1928 = vld [vmem:[#allocation4 + $0x28] sm:$0xff]
    %1930 = vset.pattern.permute.xlu0 0
    %1931 = vperm.xlu0 %1930, %v1923
    %v1932 = vpop.permute.xlu0 %1931
    %v1934 = vmul.f32 %v1925, %v1932
    %v1935 = vmul.f32 %v1926, %v1932
    %1937 = vset.pattern.permute.xlu0 0
    %1938 = vperm.xlu0 %1937, %v1924
    %v1939 = vpop.permute.xlu0 %1938
    %v1941 = vmul.f32 %v1927, %v1939
    %v1942 = vmul.f32 %v1928, %v1939
    %v1943 = vadd.f32 %v1934, %v1941
    %v1944 = vadd.f32 %v1935, %v1942
    %1945 = vst [vmem:[#allocation8] sm:$0xff] %v1943
    %1946 = vst [vmem:[#allocation8 + $0x8] sm:$0xff] %v1944
    %v1947 = vld [vmem:[#allocation4 + $0x10] sm:$0xff]
    %v1948 = vld [vmem:[#allocation4 + $0x18] sm:$0xff]
    %v1949 = vld [vmem:[#allocation4 + $0x30] sm:$0xff]
    %v1950 = vld [vmem:[#allocation4 + $0x38] sm:$0xff]
    %1951 = vset.pattern.permute.xlu0 1
    %1952 = vperm.xlu0 %1951, %v1923
    %v1953 = vpop.permute.xlu0 %1952
    %v1955 = vmul.f32 %v1947, %v1953
    %v1956 = vmul.f32 %v1948, %v1953
    %1957 = vset.pattern.permute.xlu0 1
    %1958 = vperm.xlu0 %1957, %v1924
    %v1959 = vpop.permute.xlu0 %1958
    %v1961 = vmul.f32 %v1949, %v1959
    %v1962 = vmul.f32 %v1950, %v1959
    %v1963 = vadd.f32 %v1955, %v1961
    %v1964 = vadd.f32 %v1956, %v1962
    %1965 = vst [vmem:[#allocation8 + $0x10] sm:$0xff] %v1963
    %1966 = vst [vmem:[#allocation8 + $0x18] sm:$0xff] %v1964
    // Predicated region
    $region30: #{tpu_custom_call.1} parent=1 // pred_check
      _
    $region31: #{tpu_custom_call.1} parent=1 // pred_check_branch
      %1968 = sbr.rel (0) target = $region33
    $region32: #{tpu_custom_call.1} parent=1 // pred_region
      %s1970 = ssub.s32 512, 512
      %1971 = vsyncadd [#allocation7], %s1970
      %s1972 = sshll.u32 [#allocation8], 4
      %s1973 = int_to_ptr.vmem [resolvable:$true] %s1972
      %1978 = dma.vmem_to_hbm [thread:$0]  %s1973, 512, %s6, [#allocation7], 256, 256, 16
    $region33: #{tpu_custom_call.1} parent=1 // pred_fallthru
      _
    // Predicated region
    $region34: #{tpu_custom_call.1} parent=1 // pred_check
      _
    $region35: #{tpu_custom_call.1} parent=1 // pred_check_branch
      %1980 = sbr.rel (0) target = $region37
    $region36: #{tpu_custom_call.1} parent=1 // pred_region
      %1981 = dma.done [#allocation7], 512
    $region37: #{tpu_custom_call.1} parent=1 // pred_fallthru
      _
    %1982 = vsyncpa [#allocation6], 1
    %1983 = vsyncpa [#allocation7], 1

</llo_original>
